<compile_context>
chip_gen: v7x
topology: tpu7x:2x2x1
jax: 0.10.0
libtpu: 0.0.40
codegen_flags: <defaults>
</compile_context>

<pallas_src>
import jax
import jax.numpy as jnp
from jax.experimental import pallas as pl
from jax.experimental.pallas import tpu as pltpu


def make_mlp_kernel(num_layers: int, apply_weights: bool):
    """Fused MLP kernel body operating entirely in the row-packed layout.

    Ref order: x_ref, w0, b0, ..., w_{L-1}, b_{L-1}, [wmul_ref], o_ref
      activations : (rows_blk, p * fan)
      weights     : block-diagonal (p * fan_in, p * fan_out)
      biases      : (1, p * fan_out)
    """

    def kernel(x_ref, *refs):
        if apply_weights:
            *param_refs, wmul_ref, o_ref = refs
        else:
            *param_refs, o_ref = refs
            wmul_ref = None

        compute_dtype = x_ref.dtype
        h = x_ref[...]                               # native dtype (bf16 stays bf16)
        for i in range(num_layers):
            w = param_refs[2 * i][...]               # native dtype -> native MXU matmul
            b = param_refs[2 * i + 1][...]
            acc = jnp.dot(h, w, preferred_element_type=jnp.float32)  # f32 accumulation
            acc = acc + b.astype(jnp.float32)
            if i < num_layers - 1:
                acc = jnp.maximum(acc, 0.0)          # ReLU (VPU)
                h = acc.astype(compute_dtype)        # back to native dtype for next MXU op
            else:
                h = acc                              # last layer kept in f32

        if apply_weights:
            h = h * wmul_ref[...].astype(jnp.float32)

        o_ref[...] = h.astype(o_ref.dtype)

    return kernel


def _block_diag_pack(w, p):
    """(f_in, f_out) -> (p*f_in, p*f_out): p copies of w on the diagonal."""
    if p == 1:
        return w
    return jnp.kron(jnp.eye(p, dtype=w.dtype), w)


def _tile_bias(b, p):
    """(1, f_out) -> (1, p*f_out)."""
    if p == 1:
        return b
    return jnp.tile(b, (1, p))


def _ceil_to(x, q):
    return -(-x // q) * q


def mlp_forward(coords, params, weights=None, *, tile_rows=8192, packed_width=128):
    """Fused MLP forward (ReLU hidden nonlinearity, linear last layer).

    coords:  (N, in_features)
    params:  list of (W, b) with W of shape (fan_in, fan_out) (= PyTorch weight.T)
             and b of shape (1, fan_out)
    weights: optional (N, out_features) elementwise multiplier applied to the output.
    packed_width: target MXU width for the packed hidden matmuls
             (128 for v5e, sweep 256 on v6e/v7x).
    """
    N, in_f = coords.shape
    hidden_f = params[0][0].shape[1]
    out_f = params[-1][0].shape[1]
    num_layers = len(params)
    dtype = coords.dtype

    # Row-packing factor: p logical rows per MXU row.
    p = max(1, packed_width // hidden_f)

    # Tile-size selection: rows per block must be a multiple of 32 sublanes
    # (safe for f32/bf16 packing); cap padding for tiny N; keep >= 2 grid
    # steps when possible so v7x's two TensorCores both get work.
    quantum = 32 * p
    tr = max(quantum, (tile_rows // quantum) * quantum)
    tr = min(tr, _ceil_to(N, quantum))
    if tr >= N and N > quantum:
        tr = _ceil_to((N + 1) // 2, quantum)
    n_blocks = -(-N // tr)
    N_pad = n_blocks * tr

    if N_pad != N:
        coords = jnp.pad(coords, ((0, N_pad - N), (0, 0)))
        if weights is not None:
            weights = jnp.pad(weights, ((0, N_pad - N), (0, 0)))

    # Wrapper-side (free, row-major) packing of activations: (N,f) -> (N/p, p*f).
    x_packed = coords.reshape(N_pad // p, p * in_f)

    # One-time host packing of the parameters (block-diag weights, tiled biases).
    packed_params = [(_block_diag_pack(w, p), _tile_bias(b, p)) for (w, b) in params]

    grid = (n_blocks,)
    rows_blk = tr // p

    in_specs = [pl.BlockSpec((rows_blk, p * in_f), lambda i: (i, 0))]
    args = [x_packed]
    for (w, b) in packed_params:
        # Constant index_map: Pallas fetches these blocks once and keeps them
        # resident in VMEM; no per-step weight DMA traffic.
        in_specs.append(pl.BlockSpec(w.shape, lambda i: (0, 0)))
        in_specs.append(pl.BlockSpec(b.shape, lambda i: (0, 0)))
        args.append(w)
        args.append(b)

    if weights is not None:
        wmul_packed = weights.reshape(N_pad // p, p * out_f)
        in_specs.append(pl.BlockSpec((rows_blk, p * out_f), lambda i: (i, 0)))
        args.append(wmul_packed)

    out_shape = jax.ShapeDtypeStruct((N_pad // p, p * out_f), dtype)
    out_specs = pl.BlockSpec((rows_blk, p * out_f), lambda i: (i, 0))

    # Advisory cost estimate (actual MXU flops of the dense block-diag matmuls).
    flops = 2 * (N_pad // p) * sum(int(w.shape[0]) * int(w.shape[1])
                                   for w, _ in packed_params)
    bytes_accessed = x_packed.size * x_packed.dtype.itemsize
    bytes_accessed += sum(w.size * w.dtype.itemsize + b.size * b.dtype.itemsize
                          for w, b in packed_params)
    bytes_accessed += N_pad * out_f * dtype.itemsize
    if weights is not None:
        bytes_accessed += weights.size * weights.dtype.itemsize
    cost = pl.CostEstimate(flops=int(flops), transcendentals=0,
                           bytes_accessed=int(bytes_accessed))

    kernel = make_mlp_kernel(num_layers, weights is not None)

    out = pl.pallas_call(
        kernel,
        out_shape=out_shape,
        grid=grid,
        in_specs=in_specs,
        out_specs=out_specs,
        compiler_params=pltpu.CompilerParams(dimension_semantics=("parallel",)),
        cost_estimate=cost,
    )(*args)

    out = out.reshape(N_pad, out_f)   # free row-major unpack
    if N_pad != N:
        out = out[:N]
    return out


def init_mlp_params(key, in_features, out_features, num_hidden_layers, hidden_features):
    """Deterministic init matching MLP(nonlinearity='relu'):
    weights ~ kaiming_normal (fan_in, relu) => std = sqrt(2 / fan_in);
    biases keep the nn.Linear default uniform(-1/sqrt(fan_in), 1/sqrt(fan_in))."""
    dims = [in_features] + [hidden_features] * (num_hidden_layers + 1) + [out_features]
    params = []
    for i in range(len(dims) - 1):
        fan_in, fan_out = dims[i], dims[i + 1]
        key, kw, kb = jax.random.split(key, 3)
        std = jnp.sqrt(2.0 / fan_in)
        w = jax.random.normal(kw, (fan_in, fan_out), dtype=jnp.float32) * std
        bound = 1.0 / jnp.sqrt(fan_in)
        b = jax.random.uniform(kb, (1, fan_out), minval=-bound, maxval=bound,
                               dtype=jnp.float32)
        params.append((w, b))
    return params


def mlp_reference(coords, params, weights=None):
    """Pure-JAX f32 reference for correctness check."""
    h = coords.astype(jnp.float32)
    for i, (w, b) in enumerate(params):
        h = h @ w.astype(jnp.float32) + b.astype(jnp.float32)
        if i < len(params) - 1:
            h = jnp.maximum(h, 0.0)
    if weights is not None:
        h = h * weights.astype(jnp.float32)
    return h


if __name__ == "__main__":
    # Small shapes consistent with the module: coords (N, in_features)
    in_features = 4
    out_features = 4
    num_hidden_layers = 2
    hidden_features = 32
    N = 4000            # not a multiple of the tile -> exercises the padding path

    key = jax.random.PRNGKey(0)
    key, k_coords, k_params, k_wmul = jax.random.split(key, 4)

    coords = jax.random.normal(k_coords, (N, in_features), dtype=jnp.float32)
    params = init_mlp_params(k_params, in_features, out_features,
                             num_hidden_layers, hidden_features)
    wmul = jax.random.uniform(k_wmul, (N, out_features), dtype=jnp.float32)

    ref = mlp_reference(coords, params, weights=None)
    ref_w = mlp_reference(coords, params, weights=wmul)

    # --- f32 I/O ---
    out = jax.block_until_ready(mlp_forward(coords, params, weights=None))
    assert out.shape == (N, out_features)
    assert jnp.allclose(out, ref.astype(out.dtype), atol=1e-4, rtol=1e-4)

    out_w = jax.block_until_ready(mlp_forward(coords, params, weights=wmul))
    assert out_w.shape == (N, out_features)
    assert jnp.allclose(out_w, ref_w.astype(out_w.dtype), atol=1e-4, rtol=1e-4)

    # --- bf16 I/O (native bf16 MXU matmuls, f32 accumulation inside the kernel) ---
    coords_bf = coords.astype(jnp.bfloat16)
    params_bf = [(w.astype(jnp.bfloat16), b.astype(jnp.bfloat16)) for w, b in params]
    wmul_bf = wmul.astype(jnp.bfloat16)
    ref_w_bf = mlp_reference(coords_bf, params_bf, weights=wmul_bf)
    out_bf = jax.block_until_ready(mlp_forward(coords_bf, params_bf, weights=wmul_bf))
    assert out_bf.shape == (N, out_features)
    assert out_bf.dtype == jnp.bfloat16
    assert jnp.allclose(out_bf.astype(jnp.float32), ref_w_bf, atol=1e-1, rtol=1e-1)

    # TODO(synk): only the default 'relu' path of MLP is implemented; the 'sine'
    # and 'elu' nonlinearity variants (and PyTorch RNG-exact init) are not.
    print("KERNEL_OK")
</pallas_src>

<mosaic_0001>
module attributes {stable_mosaic.version = 11 : i64} {
  func.func @kernel(%arg0: i32, %arg1: memref<512x16xf32, #tpu.memory_space<vmem>>, %arg2: memref<16x128xf32, #tpu.memory_space<vmem>>, %arg3: memref<1x128xf32, #tpu.memory_space<vmem>>, %arg4: memref<128x128xf32, #tpu.memory_space<vmem>>, %arg5: memref<1x128xf32, #tpu.memory_space<vmem>>, %arg6: memref<128x128xf32, #tpu.memory_space<vmem>>, %arg7: memref<1x128xf32, #tpu.memory_space<vmem>>, %arg8: memref<128x16xf32, #tpu.memory_space<vmem>>, %arg9: memref<1x16xf32, #tpu.memory_space<vmem>>, %arg10: memref<512x16xf32, #tpu.memory_space<vmem>>) attributes {dimension_semantics = [#tpu.dimension_semantics<parallel>], iteration_bounds = array<i64: 2>, scalar_prefetch = 0 : i64, scratch_operands = 0 : i64, tpu.core_type = #tpu.core_type<tc>, window_params = [{transform_indices = @transform_0, window_bounds = array<i64: 512, 16>}, {pipeline_mode = #tpu.pipeline_mode<synchronous>, transform_indices = @transform_1, window_bounds = array<i64: 16, 128>}, {pipeline_mode = #tpu.pipeline_mode<synchronous>, transform_indices = @transform_2, window_bounds = array<i64: 1, 128>}, {pipeline_mode = #tpu.pipeline_mode<synchronous>, transform_indices = @transform_3, window_bounds = array<i64: 128, 128>}, {pipeline_mode = #tpu.pipeline_mode<synchronous>, transform_indices = @transform_4, window_bounds = array<i64: 1, 128>}, {pipeline_mode = #tpu.pipeline_mode<synchronous>, transform_indices = @transform_5, window_bounds = array<i64: 128, 128>}, {pipeline_mode = #tpu.pipeline_mode<synchronous>, transform_indices = @transform_6, window_bounds = array<i64: 1, 128>}, {pipeline_mode = #tpu.pipeline_mode<synchronous>, transform_indices = @transform_7, window_bounds = array<i64: 128, 16>}, {pipeline_mode = #tpu.pipeline_mode<synchronous>, transform_indices = @transform_8, window_bounds = array<i64: 1, 16>}, {transform_indices = @transform_9, window_bounds = array<i64: 512, 16>}]} {
    %c0 = arith.constant 0 : index
    %c0_0 = arith.constant 0 : index
    %0 = vector.load %arg1[%c0, %c0_0] : memref<512x16xf32, #tpu.memory_space<vmem>>, vector<512x16xf32>
    %c0_1 = arith.constant 0 : index
    %c0_2 = arith.constant 0 : index
    %1 = vector.load %arg2[%c0_1, %c0_2] : memref<16x128xf32, #tpu.memory_space<vmem>>, vector<16x128xf32>
    %c0_3 = arith.constant 0 : index
    %c0_4 = arith.constant 0 : index
    %2 = vector.load %arg3[%c0_3, %c0_4] : memref<1x128xf32, #tpu.memory_space<vmem>>, vector<1x128xf32>
    %cst = arith.constant dense<0.000000e+00> : vector<512x128xf32>
    %3 = tpu.matmul %0, %1, %cst {dimension_numbers = #tpu.dot_dimension_numbers<[1], [0], [0], [1], [0, 0, 1, 1], [], []>} : vector<512x16xf32>, vector<16x128xf32>, vector<512x128xf32> -> vector<512x128xf32>
    %4 = vector.broadcast %2 : vector<1x128xf32> to vector<512x128xf32>
    %5 = arith.addf %3, %4 : vector<512x128xf32>
    %cst_5 = arith.constant 0.000000e+00 : f32
    %6 = vector.broadcast %cst_5 : f32 to vector<512x128xf32>
    %7 = arith.maximumf %5, %6 : vector<512x128xf32>
    %c0_6 = arith.constant 0 : index
    %c0_7 = arith.constant 0 : index
    %8 = vector.load %arg4[%c0_6, %c0_7] : memref<128x128xf32, #tpu.memory_space<vmem>>, vector<128x128xf32>
    %c0_8 = arith.constant 0 : index
    %c0_9 = arith.constant 0 : index
    %9 = vector.load %arg5[%c0_8, %c0_9] : memref<1x128xf32, #tpu.memory_space<vmem>>, vector<1x128xf32>
    %cst_10 = arith.constant dense<0.000000e+00> : vector<512x128xf32>
    %10 = tpu.matmul %7, %8, %cst_10 {dimension_numbers = #tpu.dot_dimension_numbers<[1], [0], [0], [1], [0, 0, 1, 1], [], []>} : vector<512x128xf32>, vector<128x128xf32>, vector<512x128xf32> -> vector<512x128xf32>
    %11 = vector.broadcast %9 : vector<1x128xf32> to vector<512x128xf32>
    %12 = arith.addf %10, %11 : vector<512x128xf32>
    %cst_11 = arith.constant 0.000000e+00 : f32
    %13 = vector.broadcast %cst_11 : f32 to vector<512x128xf32>
    %14 = arith.maximumf %12, %13 : vector<512x128xf32>
    %c0_12 = arith.constant 0 : index
    %c0_13 = arith.constant 0 : index
    %15 = vector.load %arg6[%c0_12, %c0_13] : memref<128x128xf32, #tpu.memory_space<vmem>>, vector<128x128xf32>
    %c0_14 = arith.constant 0 : index
    %c0_15 = arith.constant 0 : index
    %16 = vector.load %arg7[%c0_14, %c0_15] : memref<1x128xf32, #tpu.memory_space<vmem>>, vector<1x128xf32>
    %cst_16 = arith.constant dense<0.000000e+00> : vector<512x128xf32>
    %17 = tpu.matmul %14, %15, %cst_16 {dimension_numbers = #tpu.dot_dimension_numbers<[1], [0], [0], [1], [0, 0, 1, 1], [], []>} : vector<512x128xf32>, vector<128x128xf32>, vector<512x128xf32> -> vector<512x128xf32>
    %18 = vector.broadcast %16 : vector<1x128xf32> to vector<512x128xf32>
    %19 = arith.addf %17, %18 : vector<512x128xf32>
    %cst_17 = arith.constant 0.000000e+00 : f32
    %20 = vector.broadcast %cst_17 : f32 to vector<512x128xf32>
    %21 = arith.maximumf %19, %20 : vector<512x128xf32>
    %c0_18 = arith.constant 0 : index
    %c0_19 = arith.constant 0 : index
    %22 = vector.load %arg8[%c0_18, %c0_19] : memref<128x16xf32, #tpu.memory_space<vmem>>, vector<128x16xf32>
    %c0_20 = arith.constant 0 : index
    %c0_21 = arith.constant 0 : index
    %23 = vector.load %arg9[%c0_20, %c0_21] : memref<1x16xf32, #tpu.memory_space<vmem>>, vector<1x16xf32>
    %cst_22 = arith.constant dense<0.000000e+00> : vector<512x16xf32>
    %24 = tpu.matmul %21, %22, %cst_22 {dimension_numbers = #tpu.dot_dimension_numbers<[1], [0], [0], [1], [0, 0, 1, 1], [], []>} : vector<512x128xf32>, vector<128x16xf32>, vector<512x16xf32> -> vector<512x16xf32>
    %25 = vector.broadcast %23 : vector<1x16xf32> to vector<512x16xf32>
    %26 = arith.addf %24, %25 : vector<512x16xf32>
    %c0_23 = arith.constant 0 : index
    %c0_24 = arith.constant 0 : index
    %27 = vector.load %arg10[%c0_23, %c0_24] : memref<512x16xf32, #tpu.memory_space<vmem>>, vector<512x16xf32>
    tpu.vector_store %arg10[%c0_23, %c0_24], %26 {strides = array<i32>} : memref<512x16xf32, #tpu.memory_space<vmem>>, vector<512x16xf32>,
    return
  }
  func.func @transform_0(%arg0: i32) -> (i32, i32) {
    %c0_i32 = arith.constant 0 : i32
    %c0_i32_0 = arith.constant 0 : i32
    return %arg0, %c0_i32 : i32, i32
  }
  func.func @transform_1(%arg0: i32) -> (i32, i32) {
    %c0_i32 = arith.constant 0 : i32
    %c0_i32_0 = arith.constant 0 : i32
    %c0_i32_1 = arith.constant 0 : i32
    return %c0_i32, %c0_i32_0 : i32, i32
  }
  func.func @transform_2(%arg0: i32) -> (i32, i32) {
    %c0_i32 = arith.constant 0 : i32
    %c0_i32_0 = arith.constant 0 : i32
    %c0_i32_1 = arith.constant 0 : i32
    return %c0_i32, %c0_i32_0 : i32, i32
  }
  func.func @transform_3(%arg0: i32) -> (i32, i32) {
    %c0_i32 = arith.constant 0 : i32
    %c0_i32_0 = arith.constant 0 : i32
    %c0_i32_1 = arith.constant 0 : i32
    return %c0_i32, %c0_i32_0 : i32, i32
  }
  func.func @transform_4(%arg0: i32) -> (i32, i32) {
    %c0_i32 = arith.constant 0 : i32
    %c0_i32_0 = arith.constant 0 : i32
    %c0_i32_1 = arith.constant 0 : i32
    return %c0_i32, %c0_i32_0 : i32, i32
  }
  func.func @transform_5(%arg0: i32) -> (i32, i32) {
    %c0_i32 = arith.constant 0 : i32
    %c0_i32_0 = arith.constant 0 : i32
    %c0_i32_1 = arith.constant 0 : i32
    return %c0_i32, %c0_i32_0 : i32, i32
  }
  func.func @transform_6(%arg0: i32) -> (i32, i32) {
    %c0_i32 = arith.constant 0 : i32
    %c0_i32_0 = arith.constant 0 : i32
    %c0_i32_1 = arith.constant 0 : i32
    return %c0_i32, %c0_i32_0 : i32, i32
  }
  func.func @transform_7(%arg0: i32) -> (i32, i32) {
    %c0_i32 = arith.constant 0 : i32
    %c0_i32_0 = arith.constant 0 : i32
    %c0_i32_1 = arith.constant 0 : i32
    return %c0_i32, %c0_i32_0 : i32, i32
  }
  func.func @transform_8(%arg0: i32) -> (i32, i32) {
    %c0_i32 = arith.constant 0 : i32
    %c0_i32_0 = arith.constant 0 : i32
    %c0_i32_1 = arith.constant 0 : i32
    return %c0_i32, %c0_i32_0 : i32, i32
  }
  func.func @transform_9(%arg0: i32) -> (i32, i32) {
    %c0_i32 = arith.constant 0 : i32
    %c0_i32_0 = arith.constant 0 : i32
    return %arg0, %c0_i32 : i32, i32
  }
}

</mosaic_0001>

<llo_original>
// kernel: tpu_custom_call.1
$region0: #{tpu_custom_call.1}
  #allocation0 [shape = 'u32[]', space=smem, size = 0x4, offset = 0x4, fixed_abs, tag = 'smem constant byte address 0x4 - core index']
  #allocation1 [shape = 'u32[144,128]{1,0:T(1,128)}', space=vmem, size = 0x12000, scoped, tag = 'internal scratch']
  %s0 = inlined_call_operand.vmem [shape: f32[1024,16], index: 0, kind: input, shape index: {}]
  %s1 = inlined_call_operand.vmem [shape: f32[16,128], index: 1, kind: input, shape index: {}]
  %s2 = inlined_call_operand.vmem [shape: f32[1,128], index: 2, kind: input, shape index: {}]
  %s3 = inlined_call_operand.vmem [shape: f32[128,128], index: 3, kind: input, shape index: {}]
  %s4 = inlined_call_operand.vmem [shape: f32[1,128], index: 4, kind: input, shape index: {}]
  %s5 = inlined_call_operand.vmem [shape: f32[128,128], index: 5, kind: input, shape index: {}]
  %s6 = inlined_call_operand.vmem [shape: f32[1,128], index: 6, kind: input, shape index: {}]
  %s7 = inlined_call_operand.vmem [shape: f32[128,16], index: 7, kind: input, shape index: {}]
  %s8 = inlined_call_operand.vmem [shape: f32[1,16], index: 8, kind: input, shape index: {}]
  %s9 = inlined_call_operand.vmem [shape: f32[1024,16], index: 9, kind: output, shape index: {}]
  %s10 = sld [smem:[#allocation0]]
  $region69: #{tpu_custom_call.1} parent=0
    _
  %s12 = ssub.s32 1, %s10
  %s13 = scalar_select 0, %s12, %s10
  loop: start=0, step=1, limit=4
  $region2: #{tpu_custom_call.1} parent=0 // loop_pre_header
    _
  $region3: #{tpu_custom_call.1} parent=0 // loop_header
    %s15 = sphi 0, %s19
    %p16 = scmp.ge.s32.totalorder %s15, 4
    %s25 = sphi 0, %s27
    %s28 = sphi 0, %s25
    %s29 = sphi 0, %s28
    %s45 = sphi 0, %s29
    %s49 = sphi 0, %s49
    %s51 = sphi 0, %s49
    %s52 = sphi 0, %s51
    %s66 = sphi 0, %s52
    %s70 = sphi 0, %s70
    %s72 = sphi 0, %s70
    %s73 = sphi 0, %s72
    %s87 = sphi 0, %s73
    %s91 = sphi 0, %s91
    %s93 = sphi 0, %s91
    %s94 = sphi 0, %s93
    %s108 = sphi 0, %s94
    %s112 = sphi 0, %s112
    %s114 = sphi 0, %s112
    %s115 = sphi 0, %s114
    %s129 = sphi 0, %s115
    %s133 = sphi 0, %s133
    %s135 = sphi 0, %s133
    %s136 = sphi 0, %s135
    %s150 = sphi 0, %s136
    %s154 = sphi 0, %s154
    %s156 = sphi 0, %s154
    %s157 = sphi 0, %s156
    %s171 = sphi 0, %s157
    %s175 = sphi 0, %s175
    %s177 = sphi 0, %s175
    %s178 = sphi 0, %s177
    %s192 = sphi 0, %s178
    %s196 = sphi 0, %s196
    %s198 = sphi 0, %s196
    %s199 = sphi 0, %s198
    %s213 = sphi 0, %s199
    %s219 = sphi 0, %s221
    %s222 = sphi 0, %s219
    %s223 = sphi 0, %s222
    %s239 = sphi 0, %s223
  $region4: #{tpu_custom_call.1} parent=0 // loop_header_branch
    %18 = sbr.rel (%p16) target = $region8
  $region5: #{tpu_custom_call.1} parent=0 // loop_body
    %s20 = ssub.s32 %s15, 1
    %s21 = ssub.s32 %s15, 2
    %s22 = sadd.s32 %s15, 1
    %s23 = ssub.s32 %s15, %s22
    %p24 = scmp.eq.s32.totalorder %s23, 0
    %s26 = sadd.s32 %s25, 1
    %s27 = scalar_select %p24, %s25, %s26
    %p30 = pneg %p24
    %p31 = scmp.eq.s32.totalorder %s15, 1
    %p32 = por %p30, %p31
    %p33 = scmp.ne.s32.totalorder %s25, %s28
    %p34 = scmp.eq.s32.totalorder %s15, 0
    %p35 = por %p33, %p34
    %p36 = scmp.ne.s32.totalorder %s25, %s28
    %p37 = scmp.eq.s32.totalorder %s20, 1
    %p38 = por %p36, %p37
    %p39 = scmp.ne.s32.totalorder %s28, %s29
    %p40 = scmp.eq.s32.totalorder %s20, 0
    %p41 = por %p39, %p40
    %p42 = scmp.ne.s32.totalorder %s28, %s29
    %p43 = scmp.eq.s32.totalorder %s21, 1
    %p44 = por %p42, %p43
    %p46 = scmp.ne.s32.totalorder %s29, %s45
    %p47 = scmp.eq.s32.totalorder %s21, 0
    %p48 = por %p46, %p47
    %s50 = sadd.s32 %s49, 1
    %p53 = scmp.eq.s32.totalorder %s15, 1
    %p54 = scmp.ne.s32.totalorder %s49, %s51
    %p55 = scmp.eq.s32.totalorder %s15, 0
    %p56 = por %p54, %p55
    %p57 = scmp.ne.s32.totalorder %s49, %s51
    %p58 = scmp.eq.s32.totalorder %s20, 1
    %p59 = por %p57, %p58
    %p60 = scmp.ne.s32.totalorder %s51, %s52
    %p61 = scmp.eq.s32.totalorder %s20, 0
    %p62 = por %p60, %p61
    %p63 = scmp.ne.s32.totalorder %s51, %s52
    %p64 = scmp.eq.s32.totalorder %s21, 1
    %p65 = por %p63, %p64
    %p67 = scmp.ne.s32.totalorder %s52, %s66
    %p68 = scmp.eq.s32.totalorder %s21, 0
    %p69 = por %p67, %p68
    %s71 = sadd.s32 %s70, 1
    %p74 = scmp.eq.s32.totalorder %s15, 1
    %p75 = scmp.ne.s32.totalorder %s70, %s72
    %p76 = scmp.eq.s32.totalorder %s15, 0
    %p77 = por %p75, %p76
    %p78 = scmp.ne.s32.totalorder %s70, %s72
    %p79 = scmp.eq.s32.totalorder %s20, 1
    %p80 = por %p78, %p79
    %p81 = scmp.ne.s32.totalorder %s72, %s73
    %p82 = scmp.eq.s32.totalorder %s20, 0
    %p83 = por %p81, %p82
    %p84 = scmp.ne.s32.totalorder %s72, %s73
    %p85 = scmp.eq.s32.totalorder %s21, 1
    %p86 = por %p84, %p85
    %p88 = scmp.ne.s32.totalorder %s73, %s87
    %p89 = scmp.eq.s32.totalorder %s21, 0
    %p90 = por %p88, %p89
    %s92 = sadd.s32 %s91, 1
    %p95 = scmp.eq.s32.totalorder %s15, 1
    %p96 = scmp.ne.s32.totalorder %s91, %s93
    %p97 = scmp.eq.s32.totalorder %s15, 0
    %p98 = por %p96, %p97
    %p99 = scmp.ne.s32.totalorder %s91, %s93
    %p100 = scmp.eq.s32.totalorder %s20, 1
    %p101 = por %p99, %p100
    %p102 = scmp.ne.s32.totalorder %s93, %s94
    %p103 = scmp.eq.s32.totalorder %s20, 0
    %p104 = por %p102, %p103
    %p105 = scmp.ne.s32.totalorder %s93, %s94
    %p106 = scmp.eq.s32.totalorder %s21, 1
    %p107 = por %p105, %p106
    %p109 = scmp.ne.s32.totalorder %s94, %s108
    %p110 = scmp.eq.s32.totalorder %s21, 0
    %p111 = por %p109, %p110
    %s113 = sadd.s32 %s112, 1
    %p116 = scmp.eq.s32.totalorder %s15, 1
    %p117 = scmp.ne.s32.totalorder %s112, %s114
    %p118 = scmp.eq.s32.totalorder %s15, 0
    %p119 = por %p117, %p118
    %p120 = scmp.ne.s32.totalorder %s112, %s114
    %p121 = scmp.eq.s32.totalorder %s20, 1
    %p122 = por %p120, %p121
    %p123 = scmp.ne.s32.totalorder %s114, %s115
    %p124 = scmp.eq.s32.totalorder %s20, 0
    %p125 = por %p123, %p124
    %p126 = scmp.ne.s32.totalorder %s114, %s115
    %p127 = scmp.eq.s32.totalorder %s21, 1
    %p128 = por %p126, %p127
    %p130 = scmp.ne.s32.totalorder %s115, %s129
    %p131 = scmp.eq.s32.totalorder %s21, 0
    %p132 = por %p130, %p131
    %s134 = sadd.s32 %s133, 1
    %p137 = scmp.eq.s32.totalorder %s15, 1
    %p138 = scmp.ne.s32.totalorder %s133, %s135
    %p139 = scmp.eq.s32.totalorder %s15, 0
    %p140 = por %p138, %p139
    %p141 = scmp.ne.s32.totalorder %s133, %s135
    %p142 = scmp.eq.s32.totalorder %s20, 1
    %p143 = por %p141, %p142
    %p144 = scmp.ne.s32.totalorder %s135, %s136
    %p145 = scmp.eq.s32.totalorder %s20, 0
    %p146 = por %p144, %p145
    %p147 = scmp.ne.s32.totalorder %s135, %s136
    %p148 = scmp.eq.s32.totalorder %s21, 1
    %p149 = por %p147, %p148
    %p151 = scmp.ne.s32.totalorder %s136, %s150
    %p152 = scmp.eq.s32.totalorder %s21, 0
    %p153 = por %p151, %p152
    %s155 = sadd.s32 %s154, 1
    %p158 = scmp.eq.s32.totalorder %s15, 1
    %p159 = scmp.ne.s32.totalorder %s154, %s156
    %p160 = scmp.eq.s32.totalorder %s15, 0
    %p161 = por %p159, %p160
    %p162 = scmp.ne.s32.totalorder %s154, %s156
    %p163 = scmp.eq.s32.totalorder %s20, 1
    %p164 = por %p162, %p163
    %p165 = scmp.ne.s32.totalorder %s156, %s157
    %p166 = scmp.eq.s32.totalorder %s20, 0
    %p167 = por %p165, %p166
    %p168 = scmp.ne.s32.totalorder %s156, %s157
    %p169 = scmp.eq.s32.totalorder %s21, 1
    %p170 = por %p168, %p169
    %p172 = scmp.ne.s32.totalorder %s157, %s171
    %p173 = scmp.eq.s32.totalorder %s21, 0
    %p174 = por %p172, %p173
    %s176 = sadd.s32 %s175, 1
    %p179 = scmp.eq.s32.totalorder %s15, 1
    %p180 = scmp.ne.s32.totalorder %s175, %s177
    %p181 = scmp.eq.s32.totalorder %s15, 0
    %p182 = por %p180, %p181
    %p183 = scmp.ne.s32.totalorder %s175, %s177
    %p184 = scmp.eq.s32.totalorder %s20, 1
    %p185 = por %p183, %p184
    %p186 = scmp.ne.s32.totalorder %s177, %s178
    %p187 = scmp.eq.s32.totalorder %s20, 0
    %p188 = por %p186, %p187
    %p189 = scmp.ne.s32.totalorder %s177, %s178
    %p190 = scmp.eq.s32.totalorder %s21, 1
    %p191 = por %p189, %p190
    %p193 = scmp.ne.s32.totalorder %s178, %s192
    %p194 = scmp.eq.s32.totalorder %s21, 0
    %p195 = por %p193, %p194
    %s197 = sadd.s32 %s196, 1
    %p200 = scmp.eq.s32.totalorder %s15, 1
    %p201 = scmp.ne.s32.totalorder %s196, %s198
    %p202 = scmp.eq.s32.totalorder %s15, 0
    %p203 = por %p201, %p202
    %p204 = scmp.ne.s32.totalorder %s196, %s198
    %p205 = scmp.eq.s32.totalorder %s20, 1
    %p206 = por %p204, %p205
    %p207 = scmp.ne.s32.totalorder %s198, %s199
    %p208 = scmp.eq.s32.totalorder %s20, 0
    %p209 = por %p207, %p208
    %p210 = scmp.ne.s32.totalorder %s198, %s199
    %p211 = scmp.eq.s32.totalorder %s21, 1
    %p212 = por %p210, %p211
    %p214 = scmp.ne.s32.totalorder %s199, %s213
    %p215 = scmp.eq.s32.totalorder %s21, 0
    %p216 = por %p214, %p215
    %s217 = ssub.s32 %s15, %s22
    %p218 = scmp.eq.s32.totalorder %s217, 0
    %s220 = sadd.s32 %s219, 1
    %s221 = scalar_select %p218, %s219, %s220
    %p224 = pneg %p218
    %p225 = scmp.eq.s32.totalorder %s15, 1
    %p226 = por %p224, %p225
    %p227 = scmp.ne.s32.totalorder %s219, %s222
    %p228 = scmp.eq.s32.totalorder %s15, 0
    %p229 = por %p227, %p228
    %p230 = scmp.ne.s32.totalorder %s219, %s222
    %p231 = scmp.eq.s32.totalorder %s20, 1
    %p232 = por %p230, %p231
    %p233 = scmp.ne.s32.totalorder %s222, %s223
    %p234 = scmp.eq.s32.totalorder %s20, 0
    %p235 = por %p233, %p234
    %p236 = scmp.ne.s32.totalorder %s222, %s223
    %p237 = scmp.eq.s32.totalorder %s21, 1
    %p238 = por %p236, %p237
    %p240 = scmp.ne.s32.totalorder %s223, %s239
    %p241 = scmp.eq.s32.totalorder %s21, 0
    %p242 = por %p240, %p241
    %p243 = scmp.le.s32.totalorder 1, %s15
    %p244 = scmp.lt.s32.totalorder %s15, 3
    %p245 = pnand %p243, %p244
    %p246 = pneg %p245
    // Predicated region
    $region9: #{tpu_custom_call.1} parent=5 // pred_check
      _
    $region10: #{tpu_custom_call.1} parent=5 // pred_check_branch
      %248 = sbr.rel (%p245) target = $region12
    $region11: #{tpu_custom_call.1} parent=5 // pred_region
      %s249 = ssub.s32 %s15, 1
      // Predicated region
      $region13: #{tpu_custom_call.1} parent=11 // pred_check
        %p250 = pneg %p62
      $region14: #{tpu_custom_call.1} parent=11 // pred_check_branch
        %252 = sbr.rel (%p250) target = $region16
      $region15: #{tpu_custom_call.1} parent=11 // pred_region
        _
      $region16: #{tpu_custom_call.1} parent=11 // pred_fallthru
        _
      // Predicated region
      $region17: #{tpu_custom_call.1} parent=11 // pred_check
        %p253 = pneg %p83
      $region18: #{tpu_custom_call.1} parent=11 // pred_check_branch
        %255 = sbr.rel (%p253) target = $region20
      $region19: #{tpu_custom_call.1} parent=11 // pred_region
        _
      $region20: #{tpu_custom_call.1} parent=11 // pred_fallthru
        _
      // Predicated region
      $region21: #{tpu_custom_call.1} parent=11 // pred_check
        %p256 = pneg %p104
      $region22: #{tpu_custom_call.1} parent=11 // pred_check_branch
        %258 = sbr.rel (%p256) target = $region24
      $region23: #{tpu_custom_call.1} parent=11 // pred_region
        _
      $region24: #{tpu_custom_call.1} parent=11 // pred_fallthru
        _
      // Predicated region
      $region25: #{tpu_custom_call.1} parent=11 // pred_check
        %p259 = pneg %p125
      $region26: #{tpu_custom_call.1} parent=11 // pred_check_branch
        %261 = sbr.rel (%p259) target = $region28
      $region27: #{tpu_custom_call.1} parent=11 // pred_region
        _
      $region28: #{tpu_custom_call.1} parent=11 // pred_fallthru
        _
      // Predicated region
      $region29: #{tpu_custom_call.1} parent=11 // pred_check
        %p262 = pneg %p146
      $region30: #{tpu_custom_call.1} parent=11 // pred_check_branch
        %264 = sbr.rel (%p262) target = $region32
      $region31: #{tpu_custom_call.1} parent=11 // pred_region
        _
      $region32: #{tpu_custom_call.1} parent=11 // pred_fallthru
        _
      // Predicated region
      $region33: #{tpu_custom_call.1} parent=11 // pred_check
        %p265 = pneg %p167
      $region34: #{tpu_custom_call.1} parent=11 // pred_check_branch
        %267 = sbr.rel (%p265) target = $region36
      $region35: #{tpu_custom_call.1} parent=11 // pred_region
        _
      $region36: #{tpu_custom_call.1} parent=11 // pred_fallthru
        _
      // Predicated region
      $region37: #{tpu_custom_call.1} parent=11 // pred_check
        %p268 = pneg %p188
      $region38: #{tpu_custom_call.1} parent=11 // pred_check_branch
        %270 = sbr.rel (%p268) target = $region40
      $region39: #{tpu_custom_call.1} parent=11 // pred_region
        _
      $region40: #{tpu_custom_call.1} parent=11 // pred_fallthru
        _
      // Predicated region
      $region41: #{tpu_custom_call.1} parent=11 // pred_check
        %p271 = pneg %p209
      $region42: #{tpu_custom_call.1} parent=11 // pred_check_branch
        %273 = sbr.rel (%p271) target = $region44
      $region43: #{tpu_custom_call.1} parent=11 // pred_region
        _
      $region44: #{tpu_custom_call.1} parent=11 // pred_fallthru
        _
    $region12: #{tpu_custom_call.1} parent=5 // pred_fallthru
      _
    %p274 = scmp.lt.s32.totalorder %s15, 2
    // Predicated region
    $region45: #{tpu_custom_call.1} parent=5 // pred_check
      %p275 = pneg %p274
    $region46: #{tpu_custom_call.1} parent=5 // pred_check_branch
      %277 = sbr.rel (%p275) target = $region48
    $region47: #{tpu_custom_call.1} parent=5 // pred_region
      // Predicated region
      $region49: #{tpu_custom_call.1} parent=47 // pred_check
        %p278 = pneg %p35
      $region50: #{tpu_custom_call.1} parent=47 // pred_check_branch
        %280 = sbr.rel (%p278) target = $region52
      $region51: #{tpu_custom_call.1} parent=47 // pred_region
        %s281 = smul.u32 64, %s15
        %p282 = scmp.lt.s32.totalorder %s281, 127
        %s283 = scalar_select %p282, %s281, 127
        %s284 = smul.addr %s283, 8
        %s285 = scalar_lea.vmem %s0, %s284
        %s286 = smul.u32 64, %s15
      $region52: #{tpu_custom_call.1} parent=47 // pred_fallthru
        _
    $region48: #{tpu_custom_call.1} parent=5 // pred_fallthru
      _
    %p287 = scmp.le.s32.totalorder 1, %s15
    %p288 = scmp.lt.s32.totalorder %s15, 3
    %p289 = pnand %p287, %p288
    %p290 = pneg %p289
    // Predicated region
    $region53: #{tpu_custom_call.1} parent=5 // pred_check
      _
    $region54: #{tpu_custom_call.1} parent=5 // pred_check_branch
      %292 = sbr.rel (%p289) target = $region56
    $region55: #{tpu_custom_call.1} parent=5 // pred_region
      %s293 = ssub.s32 %s15, 1
      %s294 = smul.u32 64, %s20
      %p295 = scmp.lt.s32.totalorder %s294, 127
      %s296 = scalar_select %p295, %s294, 127
      %s297 = smul.addr %s296, 8
      %s298 = scalar_lea.vmem %s0, %s297
      %p299 = pneg %p41
      %p300 = pneg %p38
      %p301 = pneg %p62
      %p302 = pneg %p59
      %p303 = pneg %p83
      %p304 = pneg %p80
      %p305 = pneg %p104
      %p306 = pneg %p101
      %p307 = pneg %p125
      %p308 = pneg %p122
      %p309 = pneg %p146
      %p310 = pneg %p143
      %p311 = pneg %p167
      %p312 = pneg %p164
      %p313 = pneg %p188
      %p314 = pneg %p185
      %p315 = pneg %p209
      %p316 = pneg %p206
      %p317 = pneg %p235
      %p318 = pneg %p232
      %s319 = smul.u32 64, %s20
      %p320 = scmp.lt.s32.totalorder %s319, 127
      %s321 = scalar_select %p320, %s319, 127
      %s322 = smul.addr %s321, 8
      %s323 = scalar_lea.vmem %s9, %s322
      %s324 = smul.u32 64, %s20
      %p325 = scmp.lt.s32.totalorder %s324, 127
      %s326 = scalar_select %p325, %s324, 127
      %s327 = smul.addr %s326, 8
      %s328 = scalar_lea.vmem %s0, %s327
      %s329 = smul.u32 64, %s20
      %s330 = smul.u32 64, %s20
      %p331 = scmp.lt.s32.totalorder %s330, 127
      %s332 = scalar_select %p331, %s330, 127
      %s333 = smul.addr %s332, 8
      %s334 = scalar_lea.vmem %s9, %s333
      %s335 = smul.u32 64, %s20
      %v336 = vld [vmem:[%s328] sm:$0xff]
      %v337 = vld [vmem:[%s328 + $0x8] sm:$0xff]
      %v338 = vld [vmem:[%s328 + $0x10] sm:$0xff]
      %v339 = vld [vmem:[%s328 + $0x18] sm:$0xff]
      %v340 = vld [vmem:[%s328 + $0x20] sm:$0xff]
      %v341 = vld [vmem:[%s328 + $0x28] sm:$0xff]
      %v342 = vld [vmem:[%s328 + $0x30] sm:$0xff]
      %v343 = vld [vmem:[%s328 + $0x38] sm:$0xff]
      %v344 = vld [vmem:[%s328 + $0x40] sm:$0xff]
      %v345 = vld [vmem:[%s328 + $0x48] sm:$0xff]
      %v346 = vld [vmem:[%s328 + $0x50] sm:$0xff]
      %v347 = vld [vmem:[%s328 + $0x58] sm:$0xff]
      %v348 = vld [vmem:[%s328 + $0x60] sm:$0xff]
      %v349 = vld [vmem:[%s328 + $0x68] sm:$0xff]
      %v350 = vld [vmem:[%s328 + $0x70] sm:$0xff]
      %v351 = vld [vmem:[%s328 + $0x78] sm:$0xff]
      %v352 = vld [vmem:[%s328 + $0x80] sm:$0xff]
      %v353 = vld [vmem:[%s328 + $0x88] sm:$0xff]
      %v354 = vld [vmem:[%s328 + $0x90] sm:$0xff]
      %v355 = vld [vmem:[%s328 + $0x98] sm:$0xff]
      %v356 = vld [vmem:[%s328 + $0xa0] sm:$0xff]
      %v357 = vld [vmem:[%s328 + $0xa8] sm:$0xff]
      %v358 = vld [vmem:[%s328 + $0xb0] sm:$0xff]
      %v359 = vld [vmem:[%s328 + $0xb8] sm:$0xff]
      %v360 = vld [vmem:[%s328 + $0xc0] sm:$0xff]
      %v361 = vld [vmem:[%s328 + $0xc8] sm:$0xff]
      %v362 = vld [vmem:[%s328 + $0xd0] sm:$0xff]
      %v363 = vld [vmem:[%s328 + $0xd8] sm:$0xff]
      %v364 = vld [vmem:[%s328 + $0xe0] sm:$0xff]
      %v365 = vld [vmem:[%s328 + $0xe8] sm:$0xff]
      %v366 = vld [vmem:[%s328 + $0xf0] sm:$0xff]
      %v367 = vld [vmem:[%s328 + $0xf8] sm:$0xff]
      %v368 = vld [vmem:[%s328 + $0x100] sm:$0xff]
      %v369 = vld [vmem:[%s328 + $0x108] sm:$0xff]
      %v370 = vld [vmem:[%s328 + $0x110] sm:$0xff]
      %v371 = vld [vmem:[%s328 + $0x118] sm:$0xff]
      %v372 = vld [vmem:[%s328 + $0x120] sm:$0xff]
      %v373 = vld [vmem:[%s328 + $0x128] sm:$0xff]
      %v374 = vld [vmem:[%s328 + $0x130] sm:$0xff]
      %v375 = vld [vmem:[%s328 + $0x138] sm:$0xff]
      %v376 = vld [vmem:[%s328 + $0x140] sm:$0xff]
      %v377 = vld [vmem:[%s328 + $0x148] sm:$0xff]
      %v378 = vld [vmem:[%s328 + $0x150] sm:$0xff]
      %v379 = vld [vmem:[%s328 + $0x158] sm:$0xff]
      %v380 = vld [vmem:[%s328 + $0x160] sm:$0xff]
      %v381 = vld [vmem:[%s328 + $0x168] sm:$0xff]
      %v382 = vld [vmem:[%s328 + $0x170] sm:$0xff]
      %v383 = vld [vmem:[%s328 + $0x178] sm:$0xff]
      %v384 = vld [vmem:[%s328 + $0x180] sm:$0xff]
      %v385 = vld [vmem:[%s328 + $0x188] sm:$0xff]
      %v386 = vld [vmem:[%s328 + $0x190] sm:$0xff]
      %v387 = vld [vmem:[%s328 + $0x198] sm:$0xff]
      %v388 = vld [vmem:[%s328 + $0x1a0] sm:$0xff]
      %v389 = vld [vmem:[%s328 + $0x1a8] sm:$0xff]
      %v390 = vld [vmem:[%s328 + $0x1b0] sm:$0xff]
      %v391 = vld [vmem:[%s328 + $0x1b8] sm:$0xff]
      %v392 = vld [vmem:[%s328 + $0x1c0] sm:$0xff]
      %v393 = vld [vmem:[%s328 + $0x1c8] sm:$0xff]
      %v394 = vld [vmem:[%s328 + $0x1d0] sm:$0xff]
      %v395 = vld [vmem:[%s328 + $0x1d8] sm:$0xff]
      %v396 = vld [vmem:[%s328 + $0x1e0] sm:$0xff]
      %v397 = vld [vmem:[%s328 + $0x1e8] sm:$0xff]
      %v398 = vld [vmem:[%s328 + $0x1f0] sm:$0xff]
      %v399 = vld [vmem:[%s328 + $0x1f8] sm:$0xff]
      %v400 = vld [vmem:[%s1] sm:$0xff]
      %v401 = vld [vmem:[%s1 + $0x8] sm:$0xff]
      %v402 = vld [vmem:[%s2] sm:$0x1]
      %v404 = vlaneseq
      %v405 = vshrl.u32 %v404, 7
      %v406 = vsub.s32 0, %v405
      %v407 = vrot.slane %v402, %v406
      %vm409 = vcmask 130048
      %v411 = vsel %vm409, %v336, 0
      %v414 = vsel %vm409, %v337, 0
      %v417 = vsel %vm409, %v338, 0
      %v420 = vsel %vm409, %v339, 0
      %v423 = vsel %vm409, %v340, 0
      %v426 = vsel %vm409, %v341, 0
      %v429 = vsel %vm409, %v342, 0
      %v432 = vsel %vm409, %v343, 0
      %v435 = vsel %vm409, %v344, 0
      %v438 = vsel %vm409, %v345, 0
      %v441 = vsel %vm409, %v346, 0
      %v444 = vsel %vm409, %v347, 0
      %v447 = vsel %vm409, %v348, 0
      %v450 = vsel %vm409, %v349, 0
      %v453 = vsel %vm409, %v350, 0
      %v456 = vsel %vm409, %v351, 0
      %v459 = vsel %vm409, %v352, 0
      %v462 = vsel %vm409, %v353, 0
      %v465 = vsel %vm409, %v354, 0
      %v468 = vsel %vm409, %v355, 0
      %v471 = vsel %vm409, %v356, 0
      %v474 = vsel %vm409, %v357, 0
      %v477 = vsel %vm409, %v358, 0
      %v480 = vsel %vm409, %v359, 0
      %v483 = vsel %vm409, %v360, 0
      %v486 = vsel %vm409, %v361, 0
      %v489 = vsel %vm409, %v362, 0
      %v492 = vsel %vm409, %v363, 0
      %v495 = vsel %vm409, %v364, 0
      %v498 = vsel %vm409, %v365, 0
      %v501 = vsel %vm409, %v366, 0
      %v504 = vsel %vm409, %v367, 0
      %v507 = vsel %vm409, %v368, 0
      %v510 = vsel %vm409, %v369, 0
      %v513 = vsel %vm409, %v370, 0
      %v516 = vsel %vm409, %v371, 0
      %v519 = vsel %vm409, %v372, 0
      %v522 = vsel %vm409, %v373, 0
      %v525 = vsel %vm409, %v374, 0
      %v528 = vsel %vm409, %v375, 0
      %v531 = vsel %vm409, %v376, 0
      %v534 = vsel %vm409, %v377, 0
      %v537 = vsel %vm409, %v378, 0
      %v540 = vsel %vm409, %v379, 0
      %v543 = vsel %vm409, %v380, 0
      %v546 = vsel %vm409, %v381, 0
      %v549 = vsel %vm409, %v382, 0
      %v552 = vsel %vm409, %v383, 0
      %v555 = vsel %vm409, %v384, 0
      %v558 = vsel %vm409, %v385, 0
      %v561 = vsel %vm409, %v386, 0
      %v564 = vsel %vm409, %v387, 0
      %v567 = vsel %vm409, %v388, 0
      %v570 = vsel %vm409, %v389, 0
      %v573 = vsel %vm409, %v390, 0
      %v576 = vsel %vm409, %v391, 0
      %v579 = vsel %vm409, %v392, 0
      %v582 = vsel %vm409, %v393, 0
      %v585 = vsel %vm409, %v394, 0
      %v588 = vsel %vm409, %v395, 0
      %v591 = vsel %vm409, %v396, 0
      %v594 = vsel %vm409, %v397, 0
      %v597 = vsel %vm409, %v398, 0
      %v600 = vsel %vm409, %v399, 0
      %602 = vmatprep.subr.mxu0 0.0
      %603 = vmatpush1.msra.mxu0 %v400
      %604 = vmatprep.subr.mxu0 0.0
      %605 = vmatpush1.msra.mxu0 %v401
      %606 = vmatprep.subr.mxu0 0.0
      %607 = vmatpush1.msra.mxu0 0.0
      %608 = vmatprep.subr.mxu0 0.0
      %609 = vmatpush1.msra.mxu0 0.0
      %610 = vmatprep.subr.mxu0 0.0
      %611 = vmatpush1.msra.mxu0 0.0
      %612 = vmatprep.subr.mxu0 0.0
      %613 = vmatpush1.msra.mxu0 0.0
      %614 = vmatprep.subr.mxu0 0.0
      %615 = vmatpush1.msra.mxu0 0.0
      %616 = vmatprep.subr.mxu0 0.0
      %617 = vmatpush1.msra.mxu0 0.0
      %618 = vmatprep.subr.mxu0 0.0
      %619 = vmatpush1.msra.mxu0 0.0
      %620 = vmatprep.subr.mxu0 0.0
      %621 = vmatpush1.msra.mxu0 0.0
      %622 = vmatprep.subr.mxu0 0.0
      %623 = vmatpush1.msra.mxu0 0.0
      %624 = vmatprep.subr.mxu0 0.0
      %625 = vmatpush1.msra.mxu0 0.0
      %626 = vmatprep.subr.mxu0 0.0
      %627 = vmatpush1.msra.mxu0 0.0
      %628 = vmatprep.subr.mxu0 0.0
      %629 = vmatpush1.msra.mxu0 0.0
      %630 = vmatprep.subr.mxu0 0.0
      %631 = vmatpush1.msra.mxu0 0.0
      %632 = vmatprep.subr.mxu0 0.0
      %633 = vmatpush1.msra.mxu0 0.0
      %634 = vmatprep.subr.mxu0 0.0
      %635 = vmatpush1.msra.mxu0 0.0
      %636 = vmatprep.subr.mxu0 0.0
      %637 = vmatpush1.msra.mxu0 0.0
      %638 = vmatprep.subr.mxu0 0.0
      %639 = vmatpush1.msra.mxu0 0.0
      %640 = vmatprep.subr.mxu0 0.0
      %641 = vmatpush1.msra.mxu0 0.0
      %642 = vmatprep.subr.mxu0 0.0
      %643 = vmatpush1.msra.mxu0 0.0
      %644 = vmatprep.subr.mxu0 0.0
      %645 = vmatpush1.msra.mxu0 0.0
      %646 = vmatprep.subr.mxu0 0.0
      %647 = vmatpush1.msra.mxu0 0.0
      %648 = vmatprep.subr.mxu0 0.0
      %649 = vmatpush1.msra.mxu0 0.0
      %650 = vmatprep.subr.mxu0 0.0
      %651 = vmatpush1.msra.mxu0 0.0
      %652 = vmatprep.subr.mxu0 0.0
      %653 = vmatpush1.msra.mxu0 0.0
      %654 = vmatprep.subr.mxu0 0.0
      %655 = vmatpush1.msra.mxu0 0.0
      %656 = vmatprep.subr.mxu0 0.0
      %657 = vmatpush1.msra.mxu0 0.0
      %658 = vmatprep.subr.mxu0 0.0
      %659 = vmatpush1.msra.mxu0 0.0
      %660 = vmatprep.subr.mxu0 0.0
      %661 = vmatpush1.msra.mxu0 0.0
      %662 = vmatprep.subr.mxu0 0.0
      %663 = vmatpush1.msra.mxu0 0.0
      %664 = vmatprep.subr.mxu0 0.0
      %665 = vmatpush1.msra.mxu0 0.0
      %666 = vmatprep.mubr.f32.mxu0 0.0
      %667 = vmatmul.mubr.f32.gmra.mrb[0].mxu0 %v411
      %v668 = vpop.f32.mrb[0].mxu0
      %v669 = vadd.f32 %v407, %v668
      %v670 = vpop.f32.mrb[0].mxu0
      %671 = vmatprep.mubr.f32.mxu0 0.0
      %672 = vmatmul.mubr.f32.gmra.mrb[0].mxu0 %v414
      %v673 = vpop.f32.mrb[0].mxu0
      %v674 = vadd.f32 %v407, %v673
      %v675 = vpop.f32.mrb[0].mxu0
      %676 = vmatprep.mubr.f32.mxu0 0.0
      %677 = vmatmul.mubr.f32.gmra.mrb[0].mxu0 %v417
      %v678 = vpop.f32.mrb[0].mxu0
      %v679 = vadd.f32 %v407, %v678
      %v680 = vpop.f32.mrb[0].mxu0
      %681 = vmatprep.mubr.f32.mxu0 0.0
      %682 = vmatmul.mubr.f32.gmra.mrb[0].mxu0 %v420
      %v683 = vpop.f32.mrb[0].mxu0
      %v684 = vadd.f32 %v407, %v683
      %v685 = vpop.f32.mrb[0].mxu0
      %686 = vmatprep.mubr.f32.mxu0 0.0
      %687 = vmatmul.mubr.f32.gmra.mrb[0].mxu0 %v423
      %v688 = vpop.f32.mrb[0].mxu0
      %v689 = vadd.f32 %v407, %v688
      %v690 = vpop.f32.mrb[0].mxu0
      %691 = vmatprep.mubr.f32.mxu0 0.0
      %692 = vmatmul.mubr.f32.gmra.mrb[0].mxu0 %v426
      %v693 = vpop.f32.mrb[0].mxu0
      %v694 = vadd.f32 %v407, %v693
      %v695 = vpop.f32.mrb[0].mxu0
      %696 = vmatprep.mubr.f32.mxu0 0.0
      %697 = vmatmul.mubr.f32.gmra.mrb[0].mxu0 %v429
      %v698 = vpop.f32.mrb[0].mxu0
      %v699 = vadd.f32 %v407, %v698
      %v700 = vpop.f32.mrb[0].mxu0
      %701 = vmatprep.mubr.f32.mxu0 0.0
      %702 = vmatmul.mubr.f32.gmra.mrb[0].mxu0 %v432
      %v703 = vpop.f32.mrb[0].mxu0
      %v704 = vadd.f32 %v407, %v703
      %v705 = vpop.f32.mrb[0].mxu0
      %706 = vmatprep.mubr.f32.mxu0 0.0
      %707 = vmatmul.mubr.f32.gmra.mrb[0].mxu0 %v435
      %v708 = vpop.f32.mrb[0].mxu0
      %v709 = vadd.f32 %v407, %v708
      %v710 = vpop.f32.mrb[0].mxu0
      %711 = vmatprep.mubr.f32.mxu0 0.0
      %712 = vmatmul.mubr.f32.gmra.mrb[0].mxu0 %v438
      %v713 = vpop.f32.mrb[0].mxu0
      %v714 = vadd.f32 %v407, %v713
      %v715 = vpop.f32.mrb[0].mxu0
      %716 = vmatprep.mubr.f32.mxu0 0.0
      %717 = vmatmul.mubr.f32.gmra.mrb[0].mxu0 %v441
      %v718 = vpop.f32.mrb[0].mxu0
      %v719 = vadd.f32 %v407, %v718
      %v720 = vpop.f32.mrb[0].mxu0
      %721 = vmatprep.mubr.f32.mxu0 0.0
      %722 = vmatmul.mubr.f32.gmra.mrb[0].mxu0 %v444
      %v723 = vpop.f32.mrb[0].mxu0
      %v724 = vadd.f32 %v407, %v723
      %v725 = vpop.f32.mrb[0].mxu0
      %726 = vmatprep.mubr.f32.mxu0 0.0
      %727 = vmatmul.mubr.f32.gmra.mrb[0].mxu0 %v447
      %v728 = vpop.f32.mrb[0].mxu0
      %v729 = vadd.f32 %v407, %v728
      %v730 = vpop.f32.mrb[0].mxu0
      %731 = vmatprep.mubr.f32.mxu0 0.0
      %732 = vmatmul.mubr.f32.gmra.mrb[0].mxu0 %v450
      %v733 = vpop.f32.mrb[0].mxu0
      %v734 = vadd.f32 %v407, %v733
      %v735 = vpop.f32.mrb[0].mxu0
      %736 = vmatprep.mubr.f32.mxu0 0.0
      %737 = vmatmul.mubr.f32.gmra.mrb[0].mxu0 %v453
      %v738 = vpop.f32.mrb[0].mxu0
      %v739 = vadd.f32 %v407, %v738
      %v740 = vpop.f32.mrb[0].mxu0
      %741 = vmatprep.mubr.f32.mxu0 0.0
      %742 = vmatmul.mubr.f32.gmra.mrb[0].mxu0 %v456
      %v743 = vpop.f32.mrb[0].mxu0
      %v744 = vadd.f32 %v407, %v743
      %v745 = vpop.f32.mrb[0].mxu0
      %746 = vmatprep.mubr.f32.mxu0 0.0
      %747 = vmatmul.mubr.f32.gmra.mrb[0].mxu0 %v459
      %v748 = vpop.f32.mrb[0].mxu0
      %v749 = vadd.f32 %v407, %v748
      %v750 = vpop.f32.mrb[0].mxu0
      %751 = vmatprep.mubr.f32.mxu0 0.0
      %752 = vmatmul.mubr.f32.gmra.mrb[0].mxu0 %v462
      %v753 = vpop.f32.mrb[0].mxu0
      %v754 = vadd.f32 %v407, %v753
      %v755 = vpop.f32.mrb[0].mxu0
      %756 = vmatprep.mubr.f32.mxu0 0.0
      %757 = vmatmul.mubr.f32.gmra.mrb[0].mxu0 %v465
      %v758 = vpop.f32.mrb[0].mxu0
      %v759 = vadd.f32 %v407, %v758
      %v760 = vpop.f32.mrb[0].mxu0
      %761 = vmatprep.mubr.f32.mxu0 0.0
      %762 = vmatmul.mubr.f32.gmra.mrb[0].mxu0 %v468
      %v763 = vpop.f32.mrb[0].mxu0
      %v764 = vadd.f32 %v407, %v763
      %v765 = vpop.f32.mrb[0].mxu0
      %766 = vmatprep.mubr.f32.mxu0 0.0
      %767 = vmatmul.mubr.f32.gmra.mrb[0].mxu0 %v471
      %v768 = vpop.f32.mrb[0].mxu0
      %v769 = vadd.f32 %v407, %v768
      %v770 = vpop.f32.mrb[0].mxu0
      %771 = vmatprep.mubr.f32.mxu0 0.0
      %772 = vmatmul.mubr.f32.gmra.mrb[0].mxu0 %v474
      %v773 = vpop.f32.mrb[0].mxu0
      %v774 = vadd.f32 %v407, %v773
      %v775 = vpop.f32.mrb[0].mxu0
      %776 = vmatprep.mubr.f32.mxu0 0.0
      %777 = vmatmul.mubr.f32.gmra.mrb[0].mxu0 %v477
      %v778 = vpop.f32.mrb[0].mxu0
      %v779 = vadd.f32 %v407, %v778
      %v780 = vpop.f32.mrb[0].mxu0
      %781 = vmatprep.mubr.f32.mxu0 0.0
      %782 = vmatmul.mubr.f32.gmra.mrb[0].mxu0 %v480
      %v783 = vpop.f32.mrb[0].mxu0
      %v784 = vadd.f32 %v407, %v783
      %v785 = vpop.f32.mrb[0].mxu0
      %786 = vmatprep.mubr.f32.mxu0 0.0
      %787 = vmatmul.mubr.f32.gmra.mrb[0].mxu0 %v483
      %v788 = vpop.f32.mrb[0].mxu0
      %v789 = vadd.f32 %v407, %v788
      %v790 = vpop.f32.mrb[0].mxu0
      %791 = vmatprep.mubr.f32.mxu0 0.0
      %792 = vmatmul.mubr.f32.gmra.mrb[0].mxu0 %v486
      %v793 = vpop.f32.mrb[0].mxu0
      %v794 = vadd.f32 %v407, %v793
      %v795 = vpop.f32.mrb[0].mxu0
      %796 = vmatprep.mubr.f32.mxu0 0.0
      %797 = vmatmul.mubr.f32.gmra.mrb[0].mxu0 %v489
      %v798 = vpop.f32.mrb[0].mxu0
      %v799 = vadd.f32 %v407, %v798
      %v800 = vpop.f32.mrb[0].mxu0
      %801 = vmatprep.mubr.f32.mxu0 0.0
      %802 = vmatmul.mubr.f32.gmra.mrb[0].mxu0 %v492
      %v803 = vpop.f32.mrb[0].mxu0
      %v804 = vadd.f32 %v407, %v803
      %v805 = vpop.f32.mrb[0].mxu0
      %806 = vmatprep.mubr.f32.mxu0 0.0
      %807 = vmatmul.mubr.f32.gmra.mrb[0].mxu0 %v495
      %v808 = vpop.f32.mrb[0].mxu0
      %v809 = vadd.f32 %v407, %v808
      %v810 = vpop.f32.mrb[0].mxu0
      %811 = vmatprep.mubr.f32.mxu0 0.0
      %812 = vmatmul.mubr.f32.gmra.mrb[0].mxu0 %v498
      %v813 = vpop.f32.mrb[0].mxu0
      %v814 = vadd.f32 %v407, %v813
      %v815 = vpop.f32.mrb[0].mxu0
      %816 = vmatprep.mubr.f32.mxu0 0.0
      %817 = vmatmul.mubr.f32.gmra.mrb[0].mxu0 %v501
      %v818 = vpop.f32.mrb[0].mxu0
      %v819 = vadd.f32 %v407, %v818
      %v820 = vpop.f32.mrb[0].mxu0
      %821 = vmatprep.mubr.f32.mxu0 0.0
      %822 = vmatmul.mubr.f32.gmra.mrb[0].mxu0 %v504
      %v823 = vpop.f32.mrb[0].mxu0
      %v824 = vadd.f32 %v407, %v823
      %v825 = vpop.f32.mrb[0].mxu0
      %826 = vmatprep.mubr.f32.mxu0 0.0
      %827 = vmatmul.mubr.f32.gmra.mrb[0].mxu0 %v507
      %v828 = vpop.f32.mrb[0].mxu0
      %v829 = vadd.f32 %v407, %v828
      %v830 = vpop.f32.mrb[0].mxu0
      %831 = vmatprep.mubr.f32.mxu0 0.0
      %832 = vmatmul.mubr.f32.gmra.mrb[0].mxu0 %v510
      %v833 = vpop.f32.mrb[0].mxu0
      %v834 = vadd.f32 %v407, %v833
      %v835 = vpop.f32.mrb[0].mxu0
      %836 = vmatprep.mubr.f32.mxu0 0.0
      %837 = vmatmul.mubr.f32.gmra.mrb[0].mxu0 %v513
      %v838 = vpop.f32.mrb[0].mxu0
      %v839 = vadd.f32 %v407, %v838
      %v840 = vpop.f32.mrb[0].mxu0
      %841 = vmatprep.mubr.f32.mxu0 0.0
      %842 = vmatmul.mubr.f32.gmra.mrb[0].mxu0 %v516
      %v843 = vpop.f32.mrb[0].mxu0
      %v844 = vadd.f32 %v407, %v843
      %v845 = vpop.f32.mrb[0].mxu0
      %846 = vmatprep.mubr.f32.mxu0 0.0
      %847 = vmatmul.mubr.f32.gmra.mrb[0].mxu0 %v519
      %v848 = vpop.f32.mrb[0].mxu0
      %v849 = vadd.f32 %v407, %v848
      %v850 = vpop.f32.mrb[0].mxu0
      %851 = vmatprep.mubr.f32.mxu0 0.0
      %852 = vmatmul.mubr.f32.gmra.mrb[0].mxu0 %v522
      %v853 = vpop.f32.mrb[0].mxu0
      %v854 = vadd.f32 %v407, %v853
      %v855 = vpop.f32.mrb[0].mxu0
      %856 = vmatprep.mubr.f32.mxu0 0.0
      %857 = vmatmul.mubr.f32.gmra.mrb[0].mxu0 %v525
      %v858 = vpop.f32.mrb[0].mxu0
      %v859 = vadd.f32 %v407, %v858
      %v860 = vpop.f32.mrb[0].mxu0
      %861 = vmatprep.mubr.f32.mxu0 0.0
      %862 = vmatmul.mubr.f32.gmra.mrb[0].mxu0 %v528
      %v863 = vpop.f32.mrb[0].mxu0
      %v864 = vadd.f32 %v407, %v863
      %v865 = vpop.f32.mrb[0].mxu0
      %866 = vmatprep.mubr.f32.mxu0 0.0
      %867 = vmatmul.mubr.f32.gmra.mrb[0].mxu0 %v531
      %v868 = vpop.f32.mrb[0].mxu0
      %v869 = vadd.f32 %v407, %v868
      %v870 = vpop.f32.mrb[0].mxu0
      %871 = vmatprep.mubr.f32.mxu0 0.0
      %872 = vmatmul.mubr.f32.gmra.mrb[0].mxu0 %v534
      %v873 = vpop.f32.mrb[0].mxu0
      %v874 = vadd.f32 %v407, %v873
      %v875 = vpop.f32.mrb[0].mxu0
      %876 = vmatprep.mubr.f32.mxu0 0.0
      %877 = vmatmul.mubr.f32.gmra.mrb[0].mxu0 %v537
      %v878 = vpop.f32.mrb[0].mxu0
      %v879 = vadd.f32 %v407, %v878
      %v880 = vpop.f32.mrb[0].mxu0
      %881 = vmatprep.mubr.f32.mxu0 0.0
      %882 = vmatmul.mubr.f32.gmra.mrb[0].mxu0 %v540
      %v883 = vpop.f32.mrb[0].mxu0
      %v884 = vadd.f32 %v407, %v883
      %v885 = vpop.f32.mrb[0].mxu0
      %886 = vmatprep.mubr.f32.mxu0 0.0
      %887 = vmatmul.mubr.f32.gmra.mrb[0].mxu0 %v543
      %v888 = vpop.f32.mrb[0].mxu0
      %v889 = vadd.f32 %v407, %v888
      %v890 = vpop.f32.mrb[0].mxu0
      %891 = vmatprep.mubr.f32.mxu0 0.0
      %892 = vmatmul.mubr.f32.gmra.mrb[0].mxu0 %v546
      %v893 = vpop.f32.mrb[0].mxu0
      %v894 = vadd.f32 %v407, %v893
      %v895 = vpop.f32.mrb[0].mxu0
      %896 = vmatprep.mubr.f32.mxu0 0.0
      %897 = vmatmul.mubr.f32.gmra.mrb[0].mxu0 %v549
      %v898 = vpop.f32.mrb[0].mxu0
      %v899 = vadd.f32 %v407, %v898
      %v900 = vpop.f32.mrb[0].mxu0
      %901 = vmatprep.mubr.f32.mxu0 0.0
      %902 = vmatmul.mubr.f32.gmra.mrb[0].mxu0 %v552
      %v903 = vpop.f32.mrb[0].mxu0
      %v904 = vadd.f32 %v407, %v903
      %v905 = vpop.f32.mrb[0].mxu0
      %906 = vmatprep.mubr.f32.mxu0 0.0
      %907 = vmatmul.mubr.f32.gmra.mrb[0].mxu0 %v555
      %v908 = vpop.f32.mrb[0].mxu0
      %v909 = vadd.f32 %v407, %v908
      %v910 = vpop.f32.mrb[0].mxu0
      %911 = vmatprep.mubr.f32.mxu0 0.0
      %912 = vmatmul.mubr.f32.gmra.mrb[0].mxu0 %v558
      %v913 = vpop.f32.mrb[0].mxu0
      %v914 = vadd.f32 %v407, %v913
      %v915 = vpop.f32.mrb[0].mxu0
      %916 = vmatprep.mubr.f32.mxu0 0.0
      %917 = vmatmul.mubr.f32.gmra.mrb[0].mxu0 %v561
      %v918 = vpop.f32.mrb[0].mxu0
      %v919 = vadd.f32 %v407, %v918
      %v920 = vpop.f32.mrb[0].mxu0
      %921 = vmatprep.mubr.f32.mxu0 0.0
      %922 = vmatmul.mubr.f32.gmra.mrb[0].mxu0 %v564
      %v923 = vpop.f32.mrb[0].mxu0
      %v924 = vadd.f32 %v407, %v923
      %v925 = vpop.f32.mrb[0].mxu0
      %926 = vmatprep.mubr.f32.mxu0 0.0
      %927 = vmatmul.mubr.f32.gmra.mrb[0].mxu0 %v567
      %v928 = vpop.f32.mrb[0].mxu0
      %v929 = vadd.f32 %v407, %v928
      %v930 = vpop.f32.mrb[0].mxu0
      %931 = vmatprep.mubr.f32.mxu0 0.0
      %932 = vmatmul.mubr.f32.gmra.mrb[0].mxu0 %v570
      %v933 = vpop.f32.mrb[0].mxu0
      %v934 = vadd.f32 %v407, %v933
      %v935 = vpop.f32.mrb[0].mxu0
      %936 = vmatprep.mubr.f32.mxu0 0.0
      %937 = vmatmul.mubr.f32.gmra.mrb[0].mxu0 %v573
      %v938 = vpop.f32.mrb[0].mxu0
      %v939 = vadd.f32 %v407, %v938
      %v940 = vpop.f32.mrb[0].mxu0
      %941 = vmatprep.mubr.f32.mxu0 0.0
      %942 = vmatmul.mubr.f32.gmra.mrb[0].mxu0 %v576
      %v943 = vpop.f32.mrb[0].mxu0
      %v944 = vadd.f32 %v407, %v943
      %v945 = vpop.f32.mrb[0].mxu0
      %946 = vmatprep.mubr.f32.mxu0 0.0
      %947 = vmatmul.mubr.f32.gmra.mrb[0].mxu0 %v579
      %v948 = vpop.f32.mrb[0].mxu0
      %v949 = vadd.f32 %v407, %v948
      %v950 = vpop.f32.mrb[0].mxu0
      %951 = vmatprep.mubr.f32.mxu0 0.0
      %952 = vmatmul.mubr.f32.gmra.mrb[0].mxu0 %v582
      %v953 = vpop.f32.mrb[0].mxu0
      %v954 = vadd.f32 %v407, %v953
      %v955 = vpop.f32.mrb[0].mxu0
      %956 = vmatprep.mubr.f32.mxu0 0.0
      %957 = vmatmul.mubr.f32.gmra.mrb[0].mxu0 %v585
      %v958 = vpop.f32.mrb[0].mxu0
      %v959 = vadd.f32 %v407, %v958
      %v960 = vpop.f32.mrb[0].mxu0
      %961 = vmatprep.mubr.f32.mxu0 0.0
      %962 = vmatmul.mubr.f32.gmra.mrb[0].mxu0 %v588
      %v963 = vpop.f32.mrb[0].mxu0
      %v964 = vadd.f32 %v407, %v963
      %v965 = vpop.f32.mrb[0].mxu0
      %966 = vmatprep.mubr.f32.mxu0 0.0
      %967 = vmatmul.mubr.f32.gmra.mrb[0].mxu0 %v591
      %v968 = vpop.f32.mrb[0].mxu0
      %v969 = vadd.f32 %v407, %v968
      %v970 = vpop.f32.mrb[0].mxu0
      %971 = vmatprep.mubr.f32.mxu0 0.0
      %972 = vmatmul.mubr.f32.gmra.mrb[0].mxu0 %v594
      %v973 = vpop.f32.mrb[0].mxu0
      %v974 = vadd.f32 %v407, %v973
      %v975 = vpop.f32.mrb[0].mxu0
      %976 = vmatprep.mubr.f32.mxu0 0.0
      %977 = vmatmul.mubr.f32.gmra.mrb[0].mxu0 %v597
      %v978 = vpop.f32.mrb[0].mxu0
      %v979 = vadd.f32 %v407, %v978
      %v980 = vpop.f32.mrb[0].mxu0
      %981 = vmatprep.mubr.f32.mxu0 0.0
      %982 = vmatmul.mubr.f32.gmra.mrb[0].mxu0 %v600
      %v983 = vpop.f32.mrb[0].mxu0
      %v984 = vadd.f32 %v407, %v983
      %v985 = vpop.f32.mrb[0].mxu0
      %986 = vdwg.mxu0
      %v987 = vmax.f32 %v669, 0.0
      %v988 = vmax.f32 %v674, 0.0
      %v989 = vmax.f32 %v679, 0.0
      %v990 = vmax.f32 %v684, 0.0
      %v991 = vmax.f32 %v689, 0.0
      %v992 = vmax.f32 %v694, 0.0
      %v993 = vmax.f32 %v699, 0.0
      %v994 = vmax.f32 %v704, 0.0
      %v995 = vmax.f32 %v709, 0.0
      %v996 = vmax.f32 %v714, 0.0
      %v997 = vmax.f32 %v719, 0.0
      %v998 = vmax.f32 %v724, 0.0
      %v999 = vmax.f32 %v729, 0.0
      %v1000 = vmax.f32 %v734, 0.0
      %v1001 = vmax.f32 %v739, 0.0
      %v1002 = vmax.f32 %v744, 0.0
      %v1003 = vmax.f32 %v749, 0.0
      %v1004 = vmax.f32 %v754, 0.0
      %v1005 = vmax.f32 %v759, 0.0
      %v1006 = vmax.f32 %v764, 0.0
      %v1007 = vmax.f32 %v769, 0.0
      %v1008 = vmax.f32 %v774, 0.0
      %v1009 = vmax.f32 %v779, 0.0
      %v1010 = vmax.f32 %v784, 0.0
      %v1011 = vmax.f32 %v789, 0.0
      %v1012 = vmax.f32 %v794, 0.0
      %v1013 = vmax.f32 %v799, 0.0
      %v1014 = vmax.f32 %v804, 0.0
      %v1015 = vmax.f32 %v809, 0.0
      %v1016 = vmax.f32 %v814, 0.0
      %v1017 = vmax.f32 %v819, 0.0
      %v1018 = vmax.f32 %v824, 0.0
      %v1019 = vmax.f32 %v829, 0.0
      %v1020 = vmax.f32 %v834, 0.0
      %v1021 = vmax.f32 %v839, 0.0
      %v1022 = vmax.f32 %v844, 0.0
      %v1023 = vmax.f32 %v849, 0.0
      %v1024 = vmax.f32 %v854, 0.0
      %v1025 = vmax.f32 %v859, 0.0
      %v1026 = vmax.f32 %v864, 0.0
      %v1027 = vmax.f32 %v869, 0.0
      %v1028 = vmax.f32 %v874, 0.0
      %v1029 = vmax.f32 %v879, 0.0
      %v1030 = vmax.f32 %v884, 0.0
      %v1031 = vmax.f32 %v889, 0.0
      %v1032 = vmax.f32 %v894, 0.0
      %v1033 = vmax.f32 %v899, 0.0
      %v1034 = vmax.f32 %v904, 0.0
      %v1035 = vmax.f32 %v909, 0.0
      %v1036 = vmax.f32 %v914, 0.0
      %v1037 = vmax.f32 %v919, 0.0
      %v1038 = vmax.f32 %v924, 0.0
      %v1039 = vmax.f32 %v929, 0.0
      %v1040 = vmax.f32 %v934, 0.0
      %v1041 = vmax.f32 %v939, 0.0
      %v1042 = vmax.f32 %v944, 0.0
      %v1043 = vmax.f32 %v949, 0.0
      %v1044 = vmax.f32 %v954, 0.0
      %v1045 = vmax.f32 %v959, 0.0
      %v1046 = vmax.f32 %v964, 0.0
      %v1047 = vmax.f32 %v969, 0.0
      %v1048 = vmax.f32 %v974, 0.0
      %v1049 = vmax.f32 %v979, 0.0
      %v1050 = vmax.f32 %v984, 0.0
      %v1051 = vld [vmem:[%s3] sm:$0xff]
      %v1052 = vld [vmem:[%s3 + $0x8] sm:$0xff]
      %v1053 = vld [vmem:[%s3 + $0x10] sm:$0xff]
      %v1054 = vld [vmem:[%s3 + $0x18] sm:$0xff]
      %v1055 = vld [vmem:[%s3 + $0x20] sm:$0xff]
      %v1056 = vld [vmem:[%s3 + $0x28] sm:$0xff]
      %v1057 = vld [vmem:[%s3 + $0x30] sm:$0xff]
      %v1058 = vld [vmem:[%s3 + $0x38] sm:$0xff]
      %v1059 = vld [vmem:[%s3 + $0x40] sm:$0xff]
      %v1060 = vld [vmem:[%s3 + $0x48] sm:$0xff]
      %v1061 = vld [vmem:[%s3 + $0x50] sm:$0xff]
      %v1062 = vld [vmem:[%s3 + $0x58] sm:$0xff]
      %v1063 = vld [vmem:[%s3 + $0x60] sm:$0xff]
      %v1064 = vld [vmem:[%s3 + $0x68] sm:$0xff]
      %v1065 = vld [vmem:[%s3 + $0x70] sm:$0xff]
      %v1066 = vld [vmem:[%s3 + $0x78] sm:$0xff]
      %v1067 = vld [vmem:[%s4] sm:$0x1]
      %v1069 = vlaneseq
      %v1070 = vshrl.u32 %v1069, 7
      %v1071 = vsub.s32 0, %v1070
      %v1072 = vrot.slane %v1067, %v1071
      %1074 = vmatprep.subr.mxu0 0.0
      %1075 = vmatpush1.msra.mxu0 %v1051
      %1076 = vmatprep.subr.mxu0 0.0
      %1077 = vmatpush1.msra.mxu0 %v1052
      %1078 = vmatprep.subr.mxu0 0.0
      %1079 = vmatpush1.msra.mxu0 %v1053
      %1080 = vmatprep.subr.mxu0 0.0
      %1081 = vmatpush1.msra.mxu0 %v1054
      %1082 = vmatprep.subr.mxu0 0.0
      %1083 = vmatpush1.msra.mxu0 %v1055
      %1084 = vmatprep.subr.mxu0 0.0
      %1085 = vmatpush1.msra.mxu0 %v1056
      %1086 = vmatprep.subr.mxu0 0.0
      %1087 = vmatpush1.msra.mxu0 %v1057
      %1088 = vmatprep.subr.mxu0 0.0
      %1089 = vmatpush1.msra.mxu0 %v1058
      %1090 = vmatprep.subr.mxu0 0.0
      %1091 = vmatpush1.msra.mxu0 %v1059
      %1092 = vmatprep.subr.mxu0 0.0
      %1093 = vmatpush1.msra.mxu0 %v1060
      %1094 = vmatprep.subr.mxu0 0.0
      %1095 = vmatpush1.msra.mxu0 %v1061
      %1096 = vmatprep.subr.mxu0 0.0
      %1097 = vmatpush1.msra.mxu0 %v1062
      %1098 = vmatprep.subr.mxu0 0.0
      %1099 = vmatpush1.msra.mxu0 %v1063
      %1100 = vmatprep.subr.mxu0 0.0
      %1101 = vmatpush1.msra.mxu0 %v1064
      %1102 = vmatprep.subr.mxu0 0.0
      %1103 = vmatpush1.msra.mxu0 %v1065
      %1104 = vmatprep.subr.mxu0 0.0
      %1105 = vmatpush1.msra.mxu0 %v1066
      %1106 = vmatprep.subr.mxu0 0.0
      %1107 = vmatpush1.msra.mxu0 0.0
      %1108 = vmatprep.subr.mxu0 0.0
      %1109 = vmatpush1.msra.mxu0 0.0
      %1110 = vmatprep.subr.mxu0 0.0
      %1111 = vmatpush1.msra.mxu0 0.0
      %1112 = vmatprep.subr.mxu0 0.0
      %1113 = vmatpush1.msra.mxu0 0.0
      %1114 = vmatprep.subr.mxu0 0.0
      %1115 = vmatpush1.msra.mxu0 0.0
      %1116 = vmatprep.subr.mxu0 0.0
      %1117 = vmatpush1.msra.mxu0 0.0
      %1118 = vmatprep.subr.mxu0 0.0
      %1119 = vmatpush1.msra.mxu0 0.0
      %1120 = vmatprep.subr.mxu0 0.0
      %1121 = vmatpush1.msra.mxu0 0.0
      %1122 = vmatprep.subr.mxu0 0.0
      %1123 = vmatpush1.msra.mxu0 0.0
      %1124 = vmatprep.subr.mxu0 0.0
      %1125 = vmatpush1.msra.mxu0 0.0
      %1126 = vmatprep.subr.mxu0 0.0
      %1127 = vmatpush1.msra.mxu0 0.0
      %1128 = vmatprep.subr.mxu0 0.0
      %1129 = vmatpush1.msra.mxu0 0.0
      %1130 = vmatprep.subr.mxu0 0.0
      %1131 = vmatpush1.msra.mxu0 0.0
      %1132 = vmatprep.subr.mxu0 0.0
      %1133 = vmatpush1.msra.mxu0 0.0
      %1134 = vmatprep.subr.mxu0 0.0
      %1135 = vmatpush1.msra.mxu0 0.0
      %1136 = vmatprep.subr.mxu0 0.0
      %1137 = vmatpush1.msra.mxu0 0.0
      %1138 = vmatprep.mubr.f32.mxu0 0.0
      %1139 = vmatmul.mubr.f32.gmra.mrb[0].mxu0 %v987
      %v1140 = vpop.f32.mrb[0].mxu0
      %v1141 = vadd.f32 %v1072, %v1140
      %v1142 = vpop.f32.mrb[0].mxu0
      %1143 = vmatprep.mubr.f32.mxu0 0.0
      %1144 = vmatmul.mubr.f32.gmra.mrb[0].mxu0 %v988
      %v1145 = vpop.f32.mrb[0].mxu0
      %v1146 = vadd.f32 %v1072, %v1145
      %v1147 = vpop.f32.mrb[0].mxu0
      %1148 = vmatprep.mubr.f32.mxu0 0.0
      %1149 = vmatmul.mubr.f32.gmra.mrb[0].mxu0 %v989
      %v1150 = vpop.f32.mrb[0].mxu0
      %v1151 = vadd.f32 %v1072, %v1150
      %v1152 = vpop.f32.mrb[0].mxu0
      %1153 = vmatprep.mubr.f32.mxu0 0.0
      %1154 = vmatmul.mubr.f32.gmra.mrb[0].mxu0 %v990
      %v1155 = vpop.f32.mrb[0].mxu0
      %v1156 = vadd.f32 %v1072, %v1155
      %v1157 = vpop.f32.mrb[0].mxu0
      %1158 = vmatprep.mubr.f32.mxu0 0.0
      %1159 = vmatmul.mubr.f32.gmra.mrb[0].mxu0 %v991
      %v1160 = vpop.f32.mrb[0].mxu0
      %v1161 = vadd.f32 %v1072, %v1160
      %v1162 = vpop.f32.mrb[0].mxu0
      %1163 = vmatprep.mubr.f32.mxu0 0.0
      %1164 = vmatmul.mubr.f32.gmra.mrb[0].mxu0 %v992
      %v1165 = vpop.f32.mrb[0].mxu0
      %v1166 = vadd.f32 %v1072, %v1165
      %v1167 = vpop.f32.mrb[0].mxu0
      %1168 = vmatprep.mubr.f32.mxu0 0.0
      %1169 = vmatmul.mubr.f32.gmra.mrb[0].mxu0 %v993
      %v1170 = vpop.f32.mrb[0].mxu0
      %v1171 = vadd.f32 %v1072, %v1170
      %v1172 = vpop.f32.mrb[0].mxu0
      %1173 = vmatprep.mubr.f32.mxu0 0.0
      %1174 = vmatmul.mubr.f32.gmra.mrb[0].mxu0 %v994
      %v1175 = vpop.f32.mrb[0].mxu0
      %v1176 = vadd.f32 %v1072, %v1175
      %v1177 = vpop.f32.mrb[0].mxu0
      %1178 = vmatprep.mubr.f32.mxu0 0.0
      %1179 = vmatmul.mubr.f32.gmra.mrb[0].mxu0 %v995
      %v1180 = vpop.f32.mrb[0].mxu0
      %v1181 = vadd.f32 %v1072, %v1180
      %v1182 = vpop.f32.mrb[0].mxu0
      %1183 = vmatprep.mubr.f32.mxu0 0.0
      %1184 = vmatmul.mubr.f32.gmra.mrb[0].mxu0 %v996
      %v1185 = vpop.f32.mrb[0].mxu0
      %v1186 = vadd.f32 %v1072, %v1185
      %v1187 = vpop.f32.mrb[0].mxu0
      %1188 = vmatprep.mubr.f32.mxu0 0.0
      %1189 = vmatmul.mubr.f32.gmra.mrb[0].mxu0 %v997
      %v1190 = vpop.f32.mrb[0].mxu0
      %v1191 = vadd.f32 %v1072, %v1190
      %v1192 = vpop.f32.mrb[0].mxu0
      %1193 = vmatprep.mubr.f32.mxu0 0.0
      %1194 = vmatmul.mubr.f32.gmra.mrb[0].mxu0 %v998
      %v1195 = vpop.f32.mrb[0].mxu0
      %v1196 = vadd.f32 %v1072, %v1195
      %v1197 = vpop.f32.mrb[0].mxu0
      %1198 = vmatprep.mubr.f32.mxu0 0.0
      %1199 = vmatmul.mubr.f32.gmra.mrb[0].mxu0 %v999
      %v1200 = vpop.f32.mrb[0].mxu0
      %v1201 = vadd.f32 %v1072, %v1200
      %v1202 = vpop.f32.mrb[0].mxu0
      %1203 = vmatprep.mubr.f32.mxu0 0.0
      %1204 = vmatmul.mubr.f32.gmra.mrb[0].mxu0 %v1000
      %v1205 = vpop.f32.mrb[0].mxu0
      %v1206 = vadd.f32 %v1072, %v1205
      %v1207 = vpop.f32.mrb[0].mxu0
      %1208 = vmatprep.mubr.f32.mxu0 0.0
      %1209 = vmatmul.mubr.f32.gmra.mrb[0].mxu0 %v1001
      %v1210 = vpop.f32.mrb[0].mxu0
      %v1211 = vadd.f32 %v1072, %v1210
      %v1212 = vpop.f32.mrb[0].mxu0
      %1213 = vmatprep.mubr.f32.mxu0 0.0
      %1214 = vmatmul.mubr.f32.gmra.mrb[0].mxu0 %v1002
      %v1215 = vpop.f32.mrb[0].mxu0
      %v1216 = vadd.f32 %v1072, %v1215
      %v1217 = vpop.f32.mrb[0].mxu0
      %1218 = vmatprep.mubr.f32.mxu0 0.0
      %1219 = vmatmul.mubr.f32.gmra.mrb[0].mxu0 %v1003
      %v1220 = vpop.f32.mrb[0].mxu0
      %v1221 = vadd.f32 %v1072, %v1220
      %v1222 = vpop.f32.mrb[0].mxu0
      %1223 = vmatprep.mubr.f32.mxu0 0.0
      %1224 = vmatmul.mubr.f32.gmra.mrb[0].mxu0 %v1004
      %v1225 = vpop.f32.mrb[0].mxu0
      %v1226 = vadd.f32 %v1072, %v1225
      %v1227 = vpop.f32.mrb[0].mxu0
      %1228 = vmatprep.mubr.f32.mxu0 0.0
      %1229 = vmatmul.mubr.f32.gmra.mrb[0].mxu0 %v1005
      %v1230 = vpop.f32.mrb[0].mxu0
      %v1231 = vadd.f32 %v1072, %v1230
      %v1232 = vpop.f32.mrb[0].mxu0
      %1233 = vmatprep.mubr.f32.mxu0 0.0
      %1234 = vmatmul.mubr.f32.gmra.mrb[0].mxu0 %v1006
      %v1235 = vpop.f32.mrb[0].mxu0
      %v1236 = vadd.f32 %v1072, %v1235
      %v1237 = vpop.f32.mrb[0].mxu0
      %1238 = vmatprep.mubr.f32.mxu0 0.0
      %1239 = vmatmul.mubr.f32.gmra.mrb[0].mxu0 %v1007
      %v1240 = vpop.f32.mrb[0].mxu0
      %v1241 = vadd.f32 %v1072, %v1240
      %v1242 = vpop.f32.mrb[0].mxu0
      %1243 = vmatprep.mubr.f32.mxu0 0.0
      %1244 = vmatmul.mubr.f32.gmra.mrb[0].mxu0 %v1008
      %v1245 = vpop.f32.mrb[0].mxu0
      %v1246 = vadd.f32 %v1072, %v1245
      %v1247 = vpop.f32.mrb[0].mxu0
      %1248 = vmatprep.mubr.f32.mxu0 0.0
      %1249 = vmatmul.mubr.f32.gmra.mrb[0].mxu0 %v1009
      %v1250 = vpop.f32.mrb[0].mxu0
      %v1251 = vadd.f32 %v1072, %v1250
      %v1252 = vpop.f32.mrb[0].mxu0
      %1253 = vmatprep.mubr.f32.mxu0 0.0
      %1254 = vmatmul.mubr.f32.gmra.mrb[0].mxu0 %v1010
      %v1255 = vpop.f32.mrb[0].mxu0
      %v1256 = vadd.f32 %v1072, %v1255
      %v1257 = vpop.f32.mrb[0].mxu0
      %1258 = vmatprep.mubr.f32.mxu0 0.0
      %1259 = vmatmul.mubr.f32.gmra.mrb[0].mxu0 %v1011
      %v1260 = vpop.f32.mrb[0].mxu0
      %v1261 = vadd.f32 %v1072, %v1260
      %v1262 = vpop.f32.mrb[0].mxu0
      %1263 = vmatprep.mubr.f32.mxu0 0.0
      %1264 = vmatmul.mubr.f32.gmra.mrb[0].mxu0 %v1012
      %v1265 = vpop.f32.mrb[0].mxu0
      %v1266 = vadd.f32 %v1072, %v1265
      %v1267 = vpop.f32.mrb[0].mxu0
      %1268 = vmatprep.mubr.f32.mxu0 0.0
      %1269 = vmatmul.mubr.f32.gmra.mrb[0].mxu0 %v1013
      %v1270 = vpop.f32.mrb[0].mxu0
      %v1271 = vadd.f32 %v1072, %v1270
      %v1272 = vpop.f32.mrb[0].mxu0
      %1273 = vmatprep.mubr.f32.mxu0 0.0
      %1274 = vmatmul.mubr.f32.gmra.mrb[0].mxu0 %v1014
      %v1275 = vpop.f32.mrb[0].mxu0
      %v1276 = vadd.f32 %v1072, %v1275
      %v1277 = vpop.f32.mrb[0].mxu0
      %1278 = vmatprep.mubr.f32.mxu0 0.0
      %1279 = vmatmul.mubr.f32.gmra.mrb[0].mxu0 %v1015
      %v1280 = vpop.f32.mrb[0].mxu0
      %v1281 = vadd.f32 %v1072, %v1280
      %v1282 = vpop.f32.mrb[0].mxu0
      %1283 = vmatprep.mubr.f32.mxu0 0.0
      %1284 = vmatmul.mubr.f32.gmra.mrb[0].mxu0 %v1016
      %v1285 = vpop.f32.mrb[0].mxu0
      %v1286 = vadd.f32 %v1072, %v1285
      %v1287 = vpop.f32.mrb[0].mxu0
      %1288 = vmatprep.mubr.f32.mxu0 0.0
      %1289 = vmatmul.mubr.f32.gmra.mrb[0].mxu0 %v1017
      %v1290 = vpop.f32.mrb[0].mxu0
      %v1291 = vadd.f32 %v1072, %v1290
      %v1292 = vpop.f32.mrb[0].mxu0
      %1293 = vmatprep.mubr.f32.mxu0 0.0
      %1294 = vmatmul.mubr.f32.gmra.mrb[0].mxu0 %v1018
      %v1295 = vpop.f32.mrb[0].mxu0
      %v1296 = vadd.f32 %v1072, %v1295
      %v1297 = vpop.f32.mrb[0].mxu0
      %1298 = vmatprep.mubr.f32.mxu0 0.0
      %1299 = vmatmul.mubr.f32.gmra.mrb[0].mxu0 %v1019
      %v1300 = vpop.f32.mrb[0].mxu0
      %v1301 = vadd.f32 %v1072, %v1300
      %v1302 = vpop.f32.mrb[0].mxu0
      %1303 = vmatprep.mubr.f32.mxu0 0.0
      %1304 = vmatmul.mubr.f32.gmra.mrb[0].mxu0 %v1020
      %v1305 = vpop.f32.mrb[0].mxu0
      %v1306 = vadd.f32 %v1072, %v1305
      %v1307 = vpop.f32.mrb[0].mxu0
      %1308 = vmatprep.mubr.f32.mxu0 0.0
      %1309 = vmatmul.mubr.f32.gmra.mrb[0].mxu0 %v1021
      %v1310 = vpop.f32.mrb[0].mxu0
      %v1311 = vadd.f32 %v1072, %v1310
      %v1312 = vpop.f32.mrb[0].mxu0
      %1313 = vmatprep.mubr.f32.mxu0 0.0
      %1314 = vmatmul.mubr.f32.gmra.mrb[0].mxu0 %v1022
      %v1315 = vpop.f32.mrb[0].mxu0
      %v1316 = vadd.f32 %v1072, %v1315
      %v1317 = vpop.f32.mrb[0].mxu0
      %1318 = vmatprep.mubr.f32.mxu0 0.0
      %1319 = vmatmul.mubr.f32.gmra.mrb[0].mxu0 %v1023
      %v1320 = vpop.f32.mrb[0].mxu0
      %v1321 = vadd.f32 %v1072, %v1320
      %v1322 = vpop.f32.mrb[0].mxu0
      %1323 = vmatprep.mubr.f32.mxu0 0.0
      %1324 = vmatmul.mubr.f32.gmra.mrb[0].mxu0 %v1024
      %v1325 = vpop.f32.mrb[0].mxu0
      %v1326 = vadd.f32 %v1072, %v1325
      %v1327 = vpop.f32.mrb[0].mxu0
      %1328 = vmatprep.mubr.f32.mxu0 0.0
      %1329 = vmatmul.mubr.f32.gmra.mrb[0].mxu0 %v1025
      %v1330 = vpop.f32.mrb[0].mxu0
      %v1331 = vadd.f32 %v1072, %v1330
      %v1332 = vpop.f32.mrb[0].mxu0
      %1333 = vmatprep.mubr.f32.mxu0 0.0
      %1334 = vmatmul.mubr.f32.gmra.mrb[0].mxu0 %v1026
      %v1335 = vpop.f32.mrb[0].mxu0
      %v1336 = vadd.f32 %v1072, %v1335
      %v1337 = vpop.f32.mrb[0].mxu0
      %1338 = vmatprep.mubr.f32.mxu0 0.0
      %1339 = vmatmul.mubr.f32.gmra.mrb[0].mxu0 %v1027
      %v1340 = vpop.f32.mrb[0].mxu0
      %v1341 = vadd.f32 %v1072, %v1340
      %v1342 = vpop.f32.mrb[0].mxu0
      %1343 = vmatprep.mubr.f32.mxu0 0.0
      %1344 = vmatmul.mubr.f32.gmra.mrb[0].mxu0 %v1028
      %v1345 = vpop.f32.mrb[0].mxu0
      %v1346 = vadd.f32 %v1072, %v1345
      %v1347 = vpop.f32.mrb[0].mxu0
      %1348 = vmatprep.mubr.f32.mxu0 0.0
      %1349 = vmatmul.mubr.f32.gmra.mrb[0].mxu0 %v1029
      %v1350 = vpop.f32.mrb[0].mxu0
      %v1351 = vadd.f32 %v1072, %v1350
      %v1352 = vpop.f32.mrb[0].mxu0
      %1353 = vmatprep.mubr.f32.mxu0 0.0
      %1354 = vmatmul.mubr.f32.gmra.mrb[0].mxu0 %v1030
      %v1355 = vpop.f32.mrb[0].mxu0
      %v1356 = vadd.f32 %v1072, %v1355
      %v1357 = vpop.f32.mrb[0].mxu0
      %1358 = vmatprep.mubr.f32.mxu0 0.0
      %1359 = vmatmul.mubr.f32.gmra.mrb[0].mxu0 %v1031
      %v1360 = vpop.f32.mrb[0].mxu0
      %v1361 = vadd.f32 %v1072, %v1360
      %v1362 = vpop.f32.mrb[0].mxu0
      %1363 = vmatprep.mubr.f32.mxu0 0.0
      %1364 = vmatmul.mubr.f32.gmra.mrb[0].mxu0 %v1032
      %v1365 = vpop.f32.mrb[0].mxu0
      %v1366 = vadd.f32 %v1072, %v1365
      %v1367 = vpop.f32.mrb[0].mxu0
      %1368 = vmatprep.mubr.f32.mxu0 0.0
      %1369 = vmatmul.mubr.f32.gmra.mrb[0].mxu0 %v1033
      %v1370 = vpop.f32.mrb[0].mxu0
      %v1371 = vadd.f32 %v1072, %v1370
      %v1372 = vpop.f32.mrb[0].mxu0
      %1373 = vmatprep.mubr.f32.mxu0 0.0
      %1374 = vmatmul.mubr.f32.gmra.mrb[0].mxu0 %v1034
      %v1375 = vpop.f32.mrb[0].mxu0
      %v1376 = vadd.f32 %v1072, %v1375
      %v1377 = vpop.f32.mrb[0].mxu0
      %1378 = vmatprep.mubr.f32.mxu0 0.0
      %1379 = vmatmul.mubr.f32.gmra.mrb[0].mxu0 %v1035
      %v1380 = vpop.f32.mrb[0].mxu0
      %v1381 = vadd.f32 %v1072, %v1380
      %v1382 = vpop.f32.mrb[0].mxu0
      %1383 = vmatprep.mubr.f32.mxu0 0.0
      %1384 = vmatmul.mubr.f32.gmra.mrb[0].mxu0 %v1036
      %v1385 = vpop.f32.mrb[0].mxu0
      %v1386 = vadd.f32 %v1072, %v1385
      %v1387 = vpop.f32.mrb[0].mxu0
      %1388 = vmatprep.mubr.f32.mxu0 0.0
      %1389 = vmatmul.mubr.f32.gmra.mrb[0].mxu0 %v1037
      %v1390 = vpop.f32.mrb[0].mxu0
      %v1391 = vadd.f32 %v1072, %v1390
      %v1392 = vpop.f32.mrb[0].mxu0
      %1393 = vmatprep.mubr.f32.mxu0 0.0
      %1394 = vmatmul.mubr.f32.gmra.mrb[0].mxu0 %v1038
      %v1395 = vpop.f32.mrb[0].mxu0
      %v1396 = vadd.f32 %v1072, %v1395
      %v1397 = vpop.f32.mrb[0].mxu0
      %1398 = vmatprep.mubr.f32.mxu0 0.0
      %1399 = vmatmul.mubr.f32.gmra.mrb[0].mxu0 %v1039
      %v1400 = vpop.f32.mrb[0].mxu0
      %v1401 = vadd.f32 %v1072, %v1400
      %v1402 = vpop.f32.mrb[0].mxu0
      %1403 = vmatprep.mubr.f32.mxu0 0.0
      %1404 = vmatmul.mubr.f32.gmra.mrb[0].mxu0 %v1040
      %v1405 = vpop.f32.mrb[0].mxu0
      %v1406 = vadd.f32 %v1072, %v1405
      %v1407 = vpop.f32.mrb[0].mxu0
      %1408 = vmatprep.mubr.f32.mxu0 0.0
      %1409 = vmatmul.mubr.f32.gmra.mrb[0].mxu0 %v1041
      %v1410 = vpop.f32.mrb[0].mxu0
      %v1411 = vadd.f32 %v1072, %v1410
      %v1412 = vpop.f32.mrb[0].mxu0
      %1413 = vmatprep.mubr.f32.mxu0 0.0
      %1414 = vmatmul.mubr.f32.gmra.mrb[0].mxu0 %v1042
      %v1415 = vpop.f32.mrb[0].mxu0
      %v1416 = vadd.f32 %v1072, %v1415
      %v1417 = vpop.f32.mrb[0].mxu0
      %1418 = vmatprep.mubr.f32.mxu0 0.0
      %1419 = vmatmul.mubr.f32.gmra.mrb[0].mxu0 %v1043
      %v1420 = vpop.f32.mrb[0].mxu0
      %v1421 = vadd.f32 %v1072, %v1420
      %v1422 = vpop.f32.mrb[0].mxu0
      %1423 = vmatprep.mubr.f32.mxu0 0.0
      %1424 = vmatmul.mubr.f32.gmra.mrb[0].mxu0 %v1044
      %v1425 = vpop.f32.mrb[0].mxu0
      %v1426 = vadd.f32 %v1072, %v1425
      %v1427 = vpop.f32.mrb[0].mxu0
      %1428 = vmatprep.mubr.f32.mxu0 0.0
      %1429 = vmatmul.mubr.f32.gmra.mrb[0].mxu0 %v1045
      %v1430 = vpop.f32.mrb[0].mxu0
      %v1431 = vadd.f32 %v1072, %v1430
      %v1432 = vpop.f32.mrb[0].mxu0
      %1433 = vmatprep.mubr.f32.mxu0 0.0
      %1434 = vmatmul.mubr.f32.gmra.mrb[0].mxu0 %v1046
      %v1435 = vpop.f32.mrb[0].mxu0
      %v1436 = vadd.f32 %v1072, %v1435
      %v1437 = vpop.f32.mrb[0].mxu0
      %1438 = vmatprep.mubr.f32.mxu0 0.0
      %1439 = vmatmul.mubr.f32.gmra.mrb[0].mxu0 %v1047
      %v1440 = vpop.f32.mrb[0].mxu0
      %v1441 = vadd.f32 %v1072, %v1440
      %v1442 = vpop.f32.mrb[0].mxu0
      %1443 = vmatprep.mubr.f32.mxu0 0.0
      %1444 = vmatmul.mubr.f32.gmra.mrb[0].mxu0 %v1048
      %v1445 = vpop.f32.mrb[0].mxu0
      %v1446 = vadd.f32 %v1072, %v1445
      %v1447 = vpop.f32.mrb[0].mxu0
      %1448 = vmatprep.mubr.f32.mxu0 0.0
      %1449 = vmatmul.mubr.f32.gmra.mrb[0].mxu0 %v1049
      %v1450 = vpop.f32.mrb[0].mxu0
      %v1451 = vadd.f32 %v1072, %v1450
      %v1452 = vpop.f32.mrb[0].mxu0
      %1453 = vmatprep.mubr.f32.mxu0 0.0
      %1454 = vmatmul.mubr.f32.gmra.mrb[0].mxu0 %v1050
      %v1455 = vpop.f32.mrb[0].mxu0
      %v1456 = vadd.f32 %v1072, %v1455
      %v1457 = vpop.f32.mrb[0].mxu0
      %1458 = vdwg.mxu0
      %v1459 = vmax.f32 %v1141, 0.0
      %v1460 = vmax.f32 %v1146, 0.0
      %v1461 = vmax.f32 %v1151, 0.0
      %v1462 = vmax.f32 %v1156, 0.0
      %v1463 = vmax.f32 %v1161, 0.0
      %v1464 = vmax.f32 %v1166, 0.0
      %v1465 = vmax.f32 %v1171, 0.0
      %v1466 = vmax.f32 %v1176, 0.0
      %v1467 = vmax.f32 %v1181, 0.0
      %v1468 = vmax.f32 %v1186, 0.0
      %v1469 = vmax.f32 %v1191, 0.0
      %v1470 = vmax.f32 %v1196, 0.0
      %v1471 = vmax.f32 %v1201, 0.0
      %v1472 = vmax.f32 %v1206, 0.0
      %v1473 = vmax.f32 %v1211, 0.0
      %v1474 = vmax.f32 %v1216, 0.0
      %v1475 = vmax.f32 %v1221, 0.0
      %v1476 = vmax.f32 %v1226, 0.0
      %v1477 = vmax.f32 %v1231, 0.0
      %v1478 = vmax.f32 %v1236, 0.0
      %v1479 = vmax.f32 %v1241, 0.0
      %v1480 = vmax.f32 %v1246, 0.0
      %v1481 = vmax.f32 %v1251, 0.0
      %v1482 = vmax.f32 %v1256, 0.0
      %v1483 = vmax.f32 %v1261, 0.0
      %v1484 = vmax.f32 %v1266, 0.0
      %v1485 = vmax.f32 %v1271, 0.0
      %v1486 = vmax.f32 %v1276, 0.0
      %v1487 = vmax.f32 %v1281, 0.0
      %v1488 = vmax.f32 %v1286, 0.0
      %v1489 = vmax.f32 %v1291, 0.0
      %v1490 = vmax.f32 %v1296, 0.0
      %v1491 = vmax.f32 %v1301, 0.0
      %v1492 = vmax.f32 %v1306, 0.0
      %v1493 = vmax.f32 %v1311, 0.0
      %v1494 = vmax.f32 %v1316, 0.0
      %v1495 = vmax.f32 %v1321, 0.0
      %v1496 = vmax.f32 %v1326, 0.0
      %v1497 = vmax.f32 %v1331, 0.0
      %v1498 = vmax.f32 %v1336, 0.0
      %v1499 = vmax.f32 %v1341, 0.0
      %v1500 = vmax.f32 %v1346, 0.0
      %v1501 = vmax.f32 %v1351, 0.0
      %v1502 = vmax.f32 %v1356, 0.0
      %v1503 = vmax.f32 %v1361, 0.0
      %v1504 = vmax.f32 %v1366, 0.0
      %v1505 = vmax.f32 %v1371, 0.0
      %v1506 = vmax.f32 %v1376, 0.0
      %v1507 = vmax.f32 %v1381, 0.0
      %v1508 = vmax.f32 %v1386, 0.0
      %v1509 = vmax.f32 %v1391, 0.0
      %v1510 = vmax.f32 %v1396, 0.0
      %v1511 = vmax.f32 %v1401, 0.0
      %v1512 = vmax.f32 %v1406, 0.0
      %v1513 = vmax.f32 %v1411, 0.0
      %v1514 = vmax.f32 %v1416, 0.0
      %v1515 = vmax.f32 %v1421, 0.0
      %v1516 = vmax.f32 %v1426, 0.0
      %v1517 = vmax.f32 %v1431, 0.0
      %v1518 = vmax.f32 %v1436, 0.0
      %v1519 = vmax.f32 %v1441, 0.0
      %v1520 = vmax.f32 %v1446, 0.0
      %v1521 = vmax.f32 %v1451, 0.0
      %v1522 = vmax.f32 %v1456, 0.0
      %v1523 = vld [vmem:[%s5] sm:$0xff]
      %v1524 = vld [vmem:[%s5 + $0x8] sm:$0xff]
      %v1525 = vld [vmem:[%s5 + $0x10] sm:$0xff]
      %v1526 = vld [vmem:[%s5 + $0x18] sm:$0xff]
      %v1527 = vld [vmem:[%s5 + $0x20] sm:$0xff]
      %v1528 = vld [vmem:[%s5 + $0x28] sm:$0xff]
      %v1529 = vld [vmem:[%s5 + $0x30] sm:$0xff]
      %v1530 = vld [vmem:[%s5 + $0x38] sm:$0xff]
      %v1531 = vld [vmem:[%s5 + $0x40] sm:$0xff]
      %v1532 = vld [vmem:[%s5 + $0x48] sm:$0xff]
      %v1533 = vld [vmem:[%s5 + $0x50] sm:$0xff]
      %v1534 = vld [vmem:[%s5 + $0x58] sm:$0xff]
      %v1535 = vld [vmem:[%s5 + $0x60] sm:$0xff]
      %v1536 = vld [vmem:[%s5 + $0x68] sm:$0xff]
      %v1537 = vld [vmem:[%s5 + $0x70] sm:$0xff]
      %v1538 = vld [vmem:[%s5 + $0x78] sm:$0xff]
      %v1539 = vld [vmem:[%s6] sm:$0x1]
      %v1541 = vlaneseq
      %v1542 = vshrl.u32 %v1541, 7
      %v1543 = vsub.s32 0, %v1542
      %v1544 = vrot.slane %v1539, %v1543
      %1546 = vmatprep.subr.mxu0 0.0
      %1547 = vmatpush1.msra.mxu0 %v1523
      %1548 = vmatprep.subr.mxu0 0.0
      %1549 = vmatpush1.msra.mxu0 %v1524
      %1550 = vmatprep.subr.mxu0 0.0
      %1551 = vmatpush1.msra.mxu0 %v1525
      %1552 = vmatprep.subr.mxu0 0.0
      %1553 = vmatpush1.msra.mxu0 %v1526
      %1554 = vmatprep.subr.mxu0 0.0
      %1555 = vmatpush1.msra.mxu0 %v1527
      %1556 = vmatprep.subr.mxu0 0.0
      %1557 = vmatpush1.msra.mxu0 %v1528
      %1558 = vmatprep.subr.mxu0 0.0
      %1559 = vmatpush1.msra.mxu0 %v1529
      %1560 = vmatprep.subr.mxu0 0.0
      %1561 = vmatpush1.msra.mxu0 %v1530
      %1562 = vmatprep.subr.mxu0 0.0
      %1563 = vmatpush1.msra.mxu0 %v1531
      %1564 = vmatprep.subr.mxu0 0.0
      %1565 = vmatpush1.msra.mxu0 %v1532
      %1566 = vmatprep.subr.mxu0 0.0
      %1567 = vmatpush1.msra.mxu0 %v1533
      %1568 = vmatprep.subr.mxu0 0.0
      %1569 = vmatpush1.msra.mxu0 %v1534
      %1570 = vmatprep.subr.mxu0 0.0
      %1571 = vmatpush1.msra.mxu0 %v1535
      %1572 = vmatprep.subr.mxu0 0.0
      %1573 = vmatpush1.msra.mxu0 %v1536
      %1574 = vmatprep.subr.mxu0 0.0
      %1575 = vmatpush1.msra.mxu0 %v1537
      %1576 = vmatprep.subr.mxu0 0.0
      %1577 = vmatpush1.msra.mxu0 %v1538
      %1578 = vmatprep.subr.mxu0 0.0
      %1579 = vmatpush1.msra.mxu0 0.0
      %1580 = vmatprep.subr.mxu0 0.0
      %1581 = vmatpush1.msra.mxu0 0.0
      %1582 = vmatprep.subr.mxu0 0.0
      %1583 = vmatpush1.msra.mxu0 0.0
      %1584 = vmatprep.subr.mxu0 0.0
      %1585 = vmatpush1.msra.mxu0 0.0
      %1586 = vmatprep.subr.mxu0 0.0
      %1587 = vmatpush1.msra.mxu0 0.0
      %1588 = vmatprep.subr.mxu0 0.0
      %1589 = vmatpush1.msra.mxu0 0.0
      %1590 = vmatprep.subr.mxu0 0.0
      %1591 = vmatpush1.msra.mxu0 0.0
      %1592 = vmatprep.subr.mxu0 0.0
      %1593 = vmatpush1.msra.mxu0 0.0
      %1594 = vmatprep.subr.mxu0 0.0
      %1595 = vmatpush1.msra.mxu0 0.0
      %1596 = vmatprep.subr.mxu0 0.0
      %1597 = vmatpush1.msra.mxu0 0.0
      %1598 = vmatprep.subr.mxu0 0.0
      %1599 = vmatpush1.msra.mxu0 0.0
      %1600 = vmatprep.subr.mxu0 0.0
      %1601 = vmatpush1.msra.mxu0 0.0
      %1602 = vmatprep.subr.mxu0 0.0
      %1603 = vmatpush1.msra.mxu0 0.0
      %1604 = vmatprep.subr.mxu0 0.0
      %1605 = vmatpush1.msra.mxu0 0.0
      %1606 = vmatprep.subr.mxu0 0.0
      %1607 = vmatpush1.msra.mxu0 0.0
      %1608 = vmatprep.subr.mxu0 0.0
      %1609 = vmatpush1.msra.mxu0 0.0
      %1610 = vmatprep.mubr.f32.mxu0 0.0
      %1611 = vmatmul.mubr.f32.gmra.mrb[0].mxu0 %v1459
      %v1612 = vpop.f32.mrb[0].mxu0
      %v1613 = vadd.f32 %v1544, %v1612
      %v1614 = vpop.f32.mrb[0].mxu0
      %1615 = vmatprep.mubr.f32.mxu0 0.0
      %1616 = vmatmul.mubr.f32.gmra.mrb[0].mxu0 %v1460
      %v1617 = vpop.f32.mrb[0].mxu0
      %v1618 = vadd.f32 %v1544, %v1617
      %v1619 = vpop.f32.mrb[0].mxu0
      %1620 = vmatprep.mubr.f32.mxu0 0.0
      %1621 = vmatmul.mubr.f32.gmra.mrb[0].mxu0 %v1461
      %v1622 = vpop.f32.mrb[0].mxu0
      %v1623 = vadd.f32 %v1544, %v1622
      %v1624 = vpop.f32.mrb[0].mxu0
      %1625 = vmatprep.mubr.f32.mxu0 0.0
      %1626 = vmatmul.mubr.f32.gmra.mrb[0].mxu0 %v1462
      %v1627 = vpop.f32.mrb[0].mxu0
      %v1628 = vadd.f32 %v1544, %v1627
      %v1629 = vpop.f32.mrb[0].mxu0
      %1630 = vmatprep.mubr.f32.mxu0 0.0
      %1631 = vmatmul.mubr.f32.gmra.mrb[0].mxu0 %v1463
      %v1632 = vpop.f32.mrb[0].mxu0
      %v1633 = vadd.f32 %v1544, %v1632
      %v1634 = vpop.f32.mrb[0].mxu0
      %1635 = vmatprep.mubr.f32.mxu0 0.0
      %1636 = vmatmul.mubr.f32.gmra.mrb[0].mxu0 %v1464
      %v1637 = vpop.f32.mrb[0].mxu0
      %v1638 = vadd.f32 %v1544, %v1637
      %v1639 = vpop.f32.mrb[0].mxu0
      %1640 = vmatprep.mubr.f32.mxu0 0.0
      %1641 = vmatmul.mubr.f32.gmra.mrb[0].mxu0 %v1465
      %v1642 = vpop.f32.mrb[0].mxu0
      %v1643 = vadd.f32 %v1544, %v1642
      %v1644 = vpop.f32.mrb[0].mxu0
      %1645 = vmatprep.mubr.f32.mxu0 0.0
      %1646 = vmatmul.mubr.f32.gmra.mrb[0].mxu0 %v1466
      %v1647 = vpop.f32.mrb[0].mxu0
      %v1648 = vadd.f32 %v1544, %v1647
      %v1649 = vpop.f32.mrb[0].mxu0
      %1650 = vmatprep.mubr.f32.mxu0 0.0
      %1651 = vmatmul.mubr.f32.gmra.mrb[0].mxu0 %v1467
      %v1652 = vpop.f32.mrb[0].mxu0
      %v1653 = vadd.f32 %v1544, %v1652
      %v1654 = vpop.f32.mrb[0].mxu0
      %1655 = vmatprep.mubr.f32.mxu0 0.0
      %1656 = vmatmul.mubr.f32.gmra.mrb[0].mxu0 %v1468
      %v1657 = vpop.f32.mrb[0].mxu0
      %v1658 = vadd.f32 %v1544, %v1657
      %v1659 = vpop.f32.mrb[0].mxu0
      %1660 = vmatprep.mubr.f32.mxu0 0.0
      %1661 = vmatmul.mubr.f32.gmra.mrb[0].mxu0 %v1469
      %v1662 = vpop.f32.mrb[0].mxu0
      %v1663 = vadd.f32 %v1544, %v1662
      %v1664 = vpop.f32.mrb[0].mxu0
      %1665 = vmatprep.mubr.f32.mxu0 0.0
      %1666 = vmatmul.mubr.f32.gmra.mrb[0].mxu0 %v1470
      %v1667 = vpop.f32.mrb[0].mxu0
      %v1668 = vadd.f32 %v1544, %v1667
      %v1669 = vpop.f32.mrb[0].mxu0
      %1670 = vmatprep.mubr.f32.mxu0 0.0
      %1671 = vmatmul.mubr.f32.gmra.mrb[0].mxu0 %v1471
      %v1672 = vpop.f32.mrb[0].mxu0
      %v1673 = vadd.f32 %v1544, %v1672
      %v1674 = vpop.f32.mrb[0].mxu0
      %1675 = vmatprep.mubr.f32.mxu0 0.0
      %1676 = vmatmul.mubr.f32.gmra.mrb[0].mxu0 %v1472
      %v1677 = vpop.f32.mrb[0].mxu0
      %v1678 = vadd.f32 %v1544, %v1677
      %v1679 = vpop.f32.mrb[0].mxu0
      %1680 = vmatprep.mubr.f32.mxu0 0.0
      %1681 = vmatmul.mubr.f32.gmra.mrb[0].mxu0 %v1473
      %v1682 = vpop.f32.mrb[0].mxu0
      %v1683 = vadd.f32 %v1544, %v1682
      %v1684 = vpop.f32.mrb[0].mxu0
      %1685 = vmatprep.mubr.f32.mxu0 0.0
      %1686 = vmatmul.mubr.f32.gmra.mrb[0].mxu0 %v1474
      %v1687 = vpop.f32.mrb[0].mxu0
      %v1688 = vadd.f32 %v1544, %v1687
      %v1689 = vpop.f32.mrb[0].mxu0
      %1690 = vmatprep.mubr.f32.mxu0 0.0
      %1691 = vmatmul.mubr.f32.gmra.mrb[0].mxu0 %v1475
      %v1692 = vpop.f32.mrb[0].mxu0
      %v1693 = vadd.f32 %v1544, %v1692
      %v1694 = vpop.f32.mrb[0].mxu0
      %1695 = vmatprep.mubr.f32.mxu0 0.0
      %1696 = vmatmul.mubr.f32.gmra.mrb[0].mxu0 %v1476
      %v1697 = vpop.f32.mrb[0].mxu0
      %v1698 = vadd.f32 %v1544, %v1697
      %v1699 = vpop.f32.mrb[0].mxu0
      %1700 = vmatprep.mubr.f32.mxu0 0.0
      %1701 = vmatmul.mubr.f32.gmra.mrb[0].mxu0 %v1477
      %v1702 = vpop.f32.mrb[0].mxu0
      %v1703 = vadd.f32 %v1544, %v1702
      %v1704 = vpop.f32.mrb[0].mxu0
      %1705 = vmatprep.mubr.f32.mxu0 0.0
      %1706 = vmatmul.mubr.f32.gmra.mrb[0].mxu0 %v1478
      %v1707 = vpop.f32.mrb[0].mxu0
      %v1708 = vadd.f32 %v1544, %v1707
      %v1709 = vpop.f32.mrb[0].mxu0
      %1710 = vmatprep.mubr.f32.mxu0 0.0
      %1711 = vmatmul.mubr.f32.gmra.mrb[0].mxu0 %v1479
      %v1712 = vpop.f32.mrb[0].mxu0
      %v1713 = vadd.f32 %v1544, %v1712
      %v1714 = vpop.f32.mrb[0].mxu0
      %1715 = vmatprep.mubr.f32.mxu0 0.0
      %1716 = vmatmul.mubr.f32.gmra.mrb[0].mxu0 %v1480
      %v1717 = vpop.f32.mrb[0].mxu0
      %v1718 = vadd.f32 %v1544, %v1717
      %v1719 = vpop.f32.mrb[0].mxu0
      %1720 = vmatprep.mubr.f32.mxu0 0.0
      %1721 = vmatmul.mubr.f32.gmra.mrb[0].mxu0 %v1481
      %v1722 = vpop.f32.mrb[0].mxu0
      %v1723 = vadd.f32 %v1544, %v1722
      %v1724 = vpop.f32.mrb[0].mxu0
      %1725 = vmatprep.mubr.f32.mxu0 0.0
      %1726 = vmatmul.mubr.f32.gmra.mrb[0].mxu0 %v1482
      %v1727 = vpop.f32.mrb[0].mxu0
      %v1728 = vadd.f32 %v1544, %v1727
      %v1729 = vpop.f32.mrb[0].mxu0
      %1730 = vmatprep.mubr.f32.mxu0 0.0
      %1731 = vmatmul.mubr.f32.gmra.mrb[0].mxu0 %v1483
      %v1732 = vpop.f32.mrb[0].mxu0
      %v1733 = vadd.f32 %v1544, %v1732
      %v1734 = vpop.f32.mrb[0].mxu0
      %1735 = vmatprep.mubr.f32.mxu0 0.0
      %1736 = vmatmul.mubr.f32.gmra.mrb[0].mxu0 %v1484
      %v1737 = vpop.f32.mrb[0].mxu0
      %v1738 = vadd.f32 %v1544, %v1737
      %v1739 = vpop.f32.mrb[0].mxu0
      %1740 = vmatprep.mubr.f32.mxu0 0.0
      %1741 = vmatmul.mubr.f32.gmra.mrb[0].mxu0 %v1485
      %v1742 = vpop.f32.mrb[0].mxu0
      %v1743 = vadd.f32 %v1544, %v1742
      %v1744 = vpop.f32.mrb[0].mxu0
      %1745 = vmatprep.mubr.f32.mxu0 0.0
      %1746 = vmatmul.mubr.f32.gmra.mrb[0].mxu0 %v1486
      %v1747 = vpop.f32.mrb[0].mxu0
      %v1748 = vadd.f32 %v1544, %v1747
      %v1749 = vpop.f32.mrb[0].mxu0
      %1750 = vmatprep.mubr.f32.mxu0 0.0
      %1751 = vmatmul.mubr.f32.gmra.mrb[0].mxu0 %v1487
      %v1752 = vpop.f32.mrb[0].mxu0
      %v1753 = vadd.f32 %v1544, %v1752
      %v1754 = vpop.f32.mrb[0].mxu0
      %1755 = vmatprep.mubr.f32.mxu0 0.0
      %1756 = vmatmul.mubr.f32.gmra.mrb[0].mxu0 %v1488
      %v1757 = vpop.f32.mrb[0].mxu0
      %v1758 = vadd.f32 %v1544, %v1757
      %v1759 = vpop.f32.mrb[0].mxu0
      %1760 = vmatprep.mubr.f32.mxu0 0.0
      %1761 = vmatmul.mubr.f32.gmra.mrb[0].mxu0 %v1489
      %v1762 = vpop.f32.mrb[0].mxu0
      %v1763 = vadd.f32 %v1544, %v1762
      %v1764 = vpop.f32.mrb[0].mxu0
      %1765 = vmatprep.mubr.f32.mxu0 0.0
      %1766 = vmatmul.mubr.f32.gmra.mrb[0].mxu0 %v1490
      %v1767 = vpop.f32.mrb[0].mxu0
      %v1768 = vadd.f32 %v1544, %v1767
      %v1769 = vpop.f32.mrb[0].mxu0
      %1770 = vmatprep.mubr.f32.mxu0 0.0
      %1771 = vmatmul.mubr.f32.gmra.mrb[0].mxu0 %v1491
      %v1772 = vpop.f32.mrb[0].mxu0
      %v1773 = vadd.f32 %v1544, %v1772
      %v1774 = vpop.f32.mrb[0].mxu0
      %1775 = vmatprep.mubr.f32.mxu0 0.0
      %1776 = vmatmul.mubr.f32.gmra.mrb[0].mxu0 %v1492
      %v1777 = vpop.f32.mrb[0].mxu0
      %v1778 = vadd.f32 %v1544, %v1777
      %v1779 = vpop.f32.mrb[0].mxu0
      %1780 = vmatprep.mubr.f32.mxu0 0.0
      %1781 = vmatmul.mubr.f32.gmra.mrb[0].mxu0 %v1493
      %v1782 = vpop.f32.mrb[0].mxu0
      %v1783 = vadd.f32 %v1544, %v1782
      %v1784 = vpop.f32.mrb[0].mxu0
      %1785 = vmatprep.mubr.f32.mxu0 0.0
      %1786 = vmatmul.mubr.f32.gmra.mrb[0].mxu0 %v1494
      %v1787 = vpop.f32.mrb[0].mxu0
      %v1788 = vadd.f32 %v1544, %v1787
      %v1789 = vpop.f32.mrb[0].mxu0
      %1790 = vmatprep.mubr.f32.mxu0 0.0
      %1791 = vmatmul.mubr.f32.gmra.mrb[0].mxu0 %v1495
      %v1792 = vpop.f32.mrb[0].mxu0
      %v1793 = vadd.f32 %v1544, %v1792
      %v1794 = vpop.f32.mrb[0].mxu0
      %1795 = vmatprep.mubr.f32.mxu0 0.0
      %1796 = vmatmul.mubr.f32.gmra.mrb[0].mxu0 %v1496
      %v1797 = vpop.f32.mrb[0].mxu0
      %v1798 = vadd.f32 %v1544, %v1797
      %v1799 = vpop.f32.mrb[0].mxu0
      %1800 = vmatprep.mubr.f32.mxu0 0.0
      %1801 = vmatmul.mubr.f32.gmra.mrb[0].mxu0 %v1497
      %v1802 = vpop.f32.mrb[0].mxu0
      %v1803 = vadd.f32 %v1544, %v1802
      %v1804 = vpop.f32.mrb[0].mxu0
      %1805 = vmatprep.mubr.f32.mxu0 0.0
      %1806 = vmatmul.mubr.f32.gmra.mrb[0].mxu0 %v1498
      %v1807 = vpop.f32.mrb[0].mxu0
      %v1808 = vadd.f32 %v1544, %v1807
      %v1809 = vpop.f32.mrb[0].mxu0
      %1810 = vmatprep.mubr.f32.mxu0 0.0
      %1811 = vmatmul.mubr.f32.gmra.mrb[0].mxu0 %v1499
      %v1812 = vpop.f32.mrb[0].mxu0
      %v1813 = vadd.f32 %v1544, %v1812
      %v1814 = vpop.f32.mrb[0].mxu0
      %1815 = vmatprep.mubr.f32.mxu0 0.0
      %1816 = vmatmul.mubr.f32.gmra.mrb[0].mxu0 %v1500
      %v1817 = vpop.f32.mrb[0].mxu0
      %v1818 = vadd.f32 %v1544, %v1817
      %v1819 = vpop.f32.mrb[0].mxu0
      %1820 = vmatprep.mubr.f32.mxu0 0.0
      %1821 = vmatmul.mubr.f32.gmra.mrb[0].mxu0 %v1501
      %v1822 = vpop.f32.mrb[0].mxu0
      %v1823 = vadd.f32 %v1544, %v1822
      %v1824 = vpop.f32.mrb[0].mxu0
      %1825 = vmatprep.mubr.f32.mxu0 0.0
      %1826 = vmatmul.mubr.f32.gmra.mrb[0].mxu0 %v1502
      %v1827 = vpop.f32.mrb[0].mxu0
      %v1828 = vadd.f32 %v1544, %v1827
      %v1829 = vpop.f32.mrb[0].mxu0
      %1830 = vmatprep.mubr.f32.mxu0 0.0
      %1831 = vmatmul.mubr.f32.gmra.mrb[0].mxu0 %v1503
      %v1832 = vpop.f32.mrb[0].mxu0
      %v1833 = vadd.f32 %v1544, %v1832
      %v1834 = vpop.f32.mrb[0].mxu0
      %1835 = vmatprep.mubr.f32.mxu0 0.0
      %1836 = vmatmul.mubr.f32.gmra.mrb[0].mxu0 %v1504
      %v1837 = vpop.f32.mrb[0].mxu0
      %v1838 = vadd.f32 %v1544, %v1837
      %v1839 = vpop.f32.mrb[0].mxu0
      %1840 = vmatprep.mubr.f32.mxu0 0.0
      %1841 = vmatmul.mubr.f32.gmra.mrb[0].mxu0 %v1505
      %v1842 = vpop.f32.mrb[0].mxu0
      %v1843 = vadd.f32 %v1544, %v1842
      %v1844 = vpop.f32.mrb[0].mxu0
      %1845 = vmatprep.mubr.f32.mxu0 0.0
      %1846 = vmatmul.mubr.f32.gmra.mrb[0].mxu0 %v1506
      %v1847 = vpop.f32.mrb[0].mxu0
      %v1848 = vadd.f32 %v1544, %v1847
      %v1849 = vpop.f32.mrb[0].mxu0
      %1850 = vmatprep.mubr.f32.mxu0 0.0
      %1851 = vmatmul.mubr.f32.gmra.mrb[0].mxu0 %v1507
      %v1852 = vpop.f32.mrb[0].mxu0
      %v1853 = vadd.f32 %v1544, %v1852
      %v1854 = vpop.f32.mrb[0].mxu0
      %1855 = vmatprep.mubr.f32.mxu0 0.0
      %1856 = vmatmul.mubr.f32.gmra.mrb[0].mxu0 %v1508
      %v1857 = vpop.f32.mrb[0].mxu0
      %v1858 = vadd.f32 %v1544, %v1857
      %v1859 = vpop.f32.mrb[0].mxu0
      %1860 = vmatprep.mubr.f32.mxu0 0.0
      %1861 = vmatmul.mubr.f32.gmra.mrb[0].mxu0 %v1509
      %v1862 = vpop.f32.mrb[0].mxu0
      %v1863 = vadd.f32 %v1544, %v1862
      %v1864 = vpop.f32.mrb[0].mxu0
      %1865 = vmatprep.mubr.f32.mxu0 0.0
      %1866 = vmatmul.mubr.f32.gmra.mrb[0].mxu0 %v1510
      %v1867 = vpop.f32.mrb[0].mxu0
      %v1868 = vadd.f32 %v1544, %v1867
      %v1869 = vpop.f32.mrb[0].mxu0
      %1870 = vmatprep.mubr.f32.mxu0 0.0
      %1871 = vmatmul.mubr.f32.gmra.mrb[0].mxu0 %v1511
      %v1872 = vpop.f32.mrb[0].mxu0
      %v1873 = vadd.f32 %v1544, %v1872
      %v1874 = vpop.f32.mrb[0].mxu0
      %1875 = vmatprep.mubr.f32.mxu0 0.0
      %1876 = vmatmul.mubr.f32.gmra.mrb[0].mxu0 %v1512
      %v1877 = vpop.f32.mrb[0].mxu0
      %v1878 = vadd.f32 %v1544, %v1877
      %v1879 = vpop.f32.mrb[0].mxu0
      %1880 = vmatprep.mubr.f32.mxu0 0.0
      %1881 = vmatmul.mubr.f32.gmra.mrb[0].mxu0 %v1513
      %v1882 = vpop.f32.mrb[0].mxu0
      %v1883 = vadd.f32 %v1544, %v1882
      %v1884 = vpop.f32.mrb[0].mxu0
      %1885 = vmatprep.mubr.f32.mxu0 0.0
      %1886 = vmatmul.mubr.f32.gmra.mrb[0].mxu0 %v1514
      %v1887 = vpop.f32.mrb[0].mxu0
      %v1888 = vadd.f32 %v1544, %v1887
      %v1889 = vpop.f32.mrb[0].mxu0
      %1890 = vmatprep.mubr.f32.mxu0 0.0
      %1891 = vmatmul.mubr.f32.gmra.mrb[0].mxu0 %v1515
      %v1892 = vpop.f32.mrb[0].mxu0
      %v1893 = vadd.f32 %v1544, %v1892
      %v1894 = vpop.f32.mrb[0].mxu0
      %1895 = vmatprep.mubr.f32.mxu0 0.0
      %1896 = vmatmul.mubr.f32.gmra.mrb[0].mxu0 %v1516
      %v1897 = vpop.f32.mrb[0].mxu0
      %v1898 = vadd.f32 %v1544, %v1897
      %v1899 = vpop.f32.mrb[0].mxu0
      %1900 = vmatprep.mubr.f32.mxu0 0.0
      %1901 = vmatmul.mubr.f32.gmra.mrb[0].mxu0 %v1517
      %v1902 = vpop.f32.mrb[0].mxu0
      %v1903 = vadd.f32 %v1544, %v1902
      %v1904 = vpop.f32.mrb[0].mxu0
      %1905 = vmatprep.mubr.f32.mxu0 0.0
      %1906 = vmatmul.mubr.f32.gmra.mrb[0].mxu0 %v1518
      %v1907 = vpop.f32.mrb[0].mxu0
      %v1908 = vadd.f32 %v1544, %v1907
      %v1909 = vpop.f32.mrb[0].mxu0
      %1910 = vmatprep.mubr.f32.mxu0 0.0
      %1911 = vmatmul.mubr.f32.gmra.mrb[0].mxu0 %v1519
      %v1912 = vpop.f32.mrb[0].mxu0
      %v1913 = vadd.f32 %v1544, %v1912
      %v1914 = vpop.f32.mrb[0].mxu0
      %1915 = vmatprep.mubr.f32.mxu0 0.0
      %1916 = vmatmul.mubr.f32.gmra.mrb[0].mxu0 %v1520
      %v1917 = vpop.f32.mrb[0].mxu0
      %v1918 = vadd.f32 %v1544, %v1917
      %v1919 = vpop.f32.mrb[0].mxu0
      %1920 = vmatprep.mubr.f32.mxu0 0.0
      %1921 = vmatmul.mubr.f32.gmra.mrb[0].mxu0 %v1521
      %v1922 = vpop.f32.mrb[0].mxu0
      %v1923 = vadd.f32 %v1544, %v1922
      %v1924 = vpop.f32.mrb[0].mxu0
      %1925 = vmatprep.mubr.f32.mxu0 0.0
      %1926 = vmatmul.mubr.f32.gmra.mrb[0].mxu0 %v1522
      %v1927 = vpop.f32.mrb[0].mxu0
      %v1928 = vadd.f32 %v1544, %v1927
      %v1929 = vpop.f32.mrb[0].mxu0
      %1930 = vdwg.mxu0
      %v1931 = vmax.f32 %v1613, 0.0
      %v1932 = vmax.f32 %v1618, 0.0
      %v1933 = vmax.f32 %v1623, 0.0
      %v1934 = vmax.f32 %v1628, 0.0
      %v1935 = vmax.f32 %v1633, 0.0
      %v1936 = vmax.f32 %v1638, 0.0
      %v1937 = vmax.f32 %v1643, 0.0
      %v1938 = vmax.f32 %v1648, 0.0
      %v1939 = vmax.f32 %v1653, 0.0
      %v1940 = vmax.f32 %v1658, 0.0
      %v1941 = vmax.f32 %v1663, 0.0
      %v1942 = vmax.f32 %v1668, 0.0
      %v1943 = vmax.f32 %v1673, 0.0
      %v1944 = vmax.f32 %v1678, 0.0
      %v1945 = vmax.f32 %v1683, 0.0
      %v1946 = vmax.f32 %v1688, 0.0
      %v1947 = vmax.f32 %v1693, 0.0
      %v1948 = vmax.f32 %v1698, 0.0
      %v1949 = vmax.f32 %v1703, 0.0
      %v1950 = vmax.f32 %v1708, 0.0
      %v1951 = vmax.f32 %v1713, 0.0
      %v1952 = vmax.f32 %v1718, 0.0
      %v1953 = vmax.f32 %v1723, 0.0
      %v1954 = vmax.f32 %v1728, 0.0
      %v1955 = vmax.f32 %v1733, 0.0
      %v1956 = vmax.f32 %v1738, 0.0
      %v1957 = vmax.f32 %v1743, 0.0
      %v1958 = vmax.f32 %v1748, 0.0
      %v1959 = vmax.f32 %v1753, 0.0
      %v1960 = vmax.f32 %v1758, 0.0
      %v1961 = vmax.f32 %v1763, 0.0
      %v1962 = vmax.f32 %v1768, 0.0
      %v1963 = vmax.f32 %v1773, 0.0
      %v1964 = vmax.f32 %v1778, 0.0
      %v1965 = vmax.f32 %v1783, 0.0
      %v1966 = vmax.f32 %v1788, 0.0
      %v1967 = vmax.f32 %v1793, 0.0
      %v1968 = vmax.f32 %v1798, 0.0
      %v1969 = vmax.f32 %v1803, 0.0
      %v1970 = vmax.f32 %v1808, 0.0
      %v1971 = vmax.f32 %v1813, 0.0
      %v1972 = vmax.f32 %v1818, 0.0
      %v1973 = vmax.f32 %v1823, 0.0
      %v1974 = vmax.f32 %v1828, 0.0
      %v1975 = vmax.f32 %v1833, 0.0
      %v1976 = vmax.f32 %v1838, 0.0
      %v1977 = vmax.f32 %v1843, 0.0
      %v1978 = vmax.f32 %v1848, 0.0
      %v1979 = vmax.f32 %v1853, 0.0
      %v1980 = vmax.f32 %v1858, 0.0
      %v1981 = vmax.f32 %v1863, 0.0
      %v1982 = vmax.f32 %v1868, 0.0
      %v1983 = vmax.f32 %v1873, 0.0
      %v1984 = vmax.f32 %v1878, 0.0
      %v1985 = vmax.f32 %v1883, 0.0
      %v1986 = vmax.f32 %v1888, 0.0
      %v1987 = vmax.f32 %v1893, 0.0
      %v1988 = vmax.f32 %v1898, 0.0
      %v1989 = vmax.f32 %v1903, 0.0
      %v1990 = vmax.f32 %v1908, 0.0
      %v1991 = vmax.f32 %v1913, 0.0
      %v1992 = vmax.f32 %v1918, 0.0
      %v1993 = vmax.f32 %v1923, 0.0
      %v1994 = vmax.f32 %v1928, 0.0
      %v1995 = vld [vmem:[%s7] sm:$0xff]
      %v1996 = vld [vmem:[%s7 + $0x8] sm:$0xff]
      %v1997 = vld [vmem:[%s7 + $0x10] sm:$0xff]
      %v1998 = vld [vmem:[%s7 + $0x18] sm:$0xff]
      %v1999 = vld [vmem:[%s7 + $0x20] sm:$0xff]
      %v2000 = vld [vmem:[%s7 + $0x28] sm:$0xff]
      %v2001 = vld [vmem:[%s7 + $0x30] sm:$0xff]
      %v2002 = vld [vmem:[%s7 + $0x38] sm:$0xff]
      %v2003 = vld [vmem:[%s7 + $0x40] sm:$0xff]
      %v2004 = vld [vmem:[%s7 + $0x48] sm:$0xff]
      %v2005 = vld [vmem:[%s7 + $0x50] sm:$0xff]
      %v2006 = vld [vmem:[%s7 + $0x58] sm:$0xff]
      %v2007 = vld [vmem:[%s7 + $0x60] sm:$0xff]
      %v2008 = vld [vmem:[%s7 + $0x68] sm:$0xff]
      %v2009 = vld [vmem:[%s7 + $0x70] sm:$0xff]
      %v2010 = vld [vmem:[%s7 + $0x78] sm:$0xff]
      %v2011 = vld [vmem:[%s8] sm:$0x1]
      %v2013 = vlaneseq
      %v2014 = vshrl.u32 %v2013, 7
      %v2015 = vsub.s32 0, %v2014
      %v2016 = vrot.slane %v2011, %v2015
      %2018 = vmatprep.subr.mxu0 0.0
      %2019 = vmatpush1.msra.mxu0 %v1995
      %2020 = vmatprep.subr.mxu0 0.0
      %2021 = vmatpush1.msra.mxu0 %v1996
      %2022 = vmatprep.subr.mxu0 0.0
      %2023 = vmatpush1.msra.mxu0 %v1997
      %2024 = vmatprep.subr.mxu0 0.0
      %2025 = vmatpush1.msra.mxu0 %v1998
      %2026 = vmatprep.subr.mxu0 0.0
      %2027 = vmatpush1.msra.mxu0 %v1999
      %2028 = vmatprep.subr.mxu0 0.0
      %2029 = vmatpush1.msra.mxu0 %v2000
      %2030 = vmatprep.subr.mxu0 0.0
      %2031 = vmatpush1.msra.mxu0 %v2001
      %2032 = vmatprep.subr.mxu0 0.0
      %2033 = vmatpush1.msra.mxu0 %v2002
      %2034 = vmatprep.subr.mxu0 0.0
      %2035 = vmatpush1.msra.mxu0 %v2003
      %2036 = vmatprep.subr.mxu0 0.0
      %2037 = vmatpush1.msra.mxu0 %v2004
      %2038 = vmatprep.subr.mxu0 0.0
      %2039 = vmatpush1.msra.mxu0 %v2005
      %2040 = vmatprep.subr.mxu0 0.0
      %2041 = vmatpush1.msra.mxu0 %v2006
      %2042 = vmatprep.subr.mxu0 0.0
      %2043 = vmatpush1.msra.mxu0 %v2007
      %2044 = vmatprep.subr.mxu0 0.0
      %2045 = vmatpush1.msra.mxu0 %v2008
      %2046 = vmatprep.subr.mxu0 0.0
      %2047 = vmatpush1.msra.mxu0 %v2009
      %2048 = vmatprep.subr.mxu0 0.0
      %2049 = vmatpush1.msra.mxu0 %v2010
      %2050 = vmatprep.subr.mxu0 0.0
      %2051 = vmatpush1.msra.mxu0 0.0
      %2052 = vmatprep.subr.mxu0 0.0
      %2053 = vmatpush1.msra.mxu0 0.0
      %2054 = vmatprep.subr.mxu0 0.0
      %2055 = vmatpush1.msra.mxu0 0.0
      %2056 = vmatprep.subr.mxu0 0.0
      %2057 = vmatpush1.msra.mxu0 0.0
      %2058 = vmatprep.subr.mxu0 0.0
      %2059 = vmatpush1.msra.mxu0 0.0
      %2060 = vmatprep.subr.mxu0 0.0
      %2061 = vmatpush1.msra.mxu0 0.0
      %2062 = vmatprep.subr.mxu0 0.0
      %2063 = vmatpush1.msra.mxu0 0.0
      %2064 = vmatprep.subr.mxu0 0.0
      %2065 = vmatpush1.msra.mxu0 0.0
      %2066 = vmatprep.subr.mxu0 0.0
      %2067 = vmatpush1.msra.mxu0 0.0
      %2068 = vmatprep.subr.mxu0 0.0
      %2069 = vmatpush1.msra.mxu0 0.0
      %2070 = vmatprep.subr.mxu0 0.0
      %2071 = vmatpush1.msra.mxu0 0.0
      %2072 = vmatprep.subr.mxu0 0.0
      %2073 = vmatpush1.msra.mxu0 0.0
      %2074 = vmatprep.subr.mxu0 0.0
      %2075 = vmatpush1.msra.mxu0 0.0
      %2076 = vmatprep.subr.mxu0 0.0
      %2077 = vmatpush1.msra.mxu0 0.0
      %2078 = vmatprep.subr.mxu0 0.0
      %2079 = vmatpush1.msra.mxu0 0.0
      %2080 = vmatprep.subr.mxu0 0.0
      %2081 = vmatpush1.msra.mxu0 0.0
      %2082 = vmatprep.mubr.f32.mxu0 0.0
      %2083 = vmatmul.mubr.f32.gmra.mrb[0].mxu0 %v1931
      %v2084 = vpop.f32.mrb[0].mxu0
      %v2085 = vadd.f32 %v2016, %v2084
      %v2086 = vpop.f32.mrb[0].mxu0
      %2087 = vmatprep.mubr.f32.mxu0 0.0
      %2088 = vmatmul.mubr.f32.gmra.mrb[0].mxu0 %v1932
      %v2089 = vpop.f32.mrb[0].mxu0
      %v2090 = vadd.f32 %v2016, %v2089
      %v2091 = vpop.f32.mrb[0].mxu0
      %2092 = vmatprep.mubr.f32.mxu0 0.0
      %2093 = vmatmul.mubr.f32.gmra.mrb[0].mxu0 %v1933
      %v2094 = vpop.f32.mrb[0].mxu0
      %v2095 = vadd.f32 %v2016, %v2094
      %v2096 = vpop.f32.mrb[0].mxu0
      %2097 = vmatprep.mubr.f32.mxu0 0.0
      %2098 = vmatmul.mubr.f32.gmra.mrb[0].mxu0 %v1934
      %v2099 = vpop.f32.mrb[0].mxu0
      %v2100 = vadd.f32 %v2016, %v2099
      %v2101 = vpop.f32.mrb[0].mxu0
      %2102 = vmatprep.mubr.f32.mxu0 0.0
      %2103 = vmatmul.mubr.f32.gmra.mrb[0].mxu0 %v1935
      %v2104 = vpop.f32.mrb[0].mxu0
      %v2105 = vadd.f32 %v2016, %v2104
      %v2106 = vpop.f32.mrb[0].mxu0
      %2107 = vmatprep.mubr.f32.mxu0 0.0
      %2108 = vmatmul.mubr.f32.gmra.mrb[0].mxu0 %v1936
      %v2109 = vpop.f32.mrb[0].mxu0
      %v2110 = vadd.f32 %v2016, %v2109
      %v2111 = vpop.f32.mrb[0].mxu0
      %2112 = vmatprep.mubr.f32.mxu0 0.0
      %2113 = vmatmul.mubr.f32.gmra.mrb[0].mxu0 %v1937
      %v2114 = vpop.f32.mrb[0].mxu0
      %v2115 = vadd.f32 %v2016, %v2114
      %v2116 = vpop.f32.mrb[0].mxu0
      %2117 = vmatprep.mubr.f32.mxu0 0.0
      %2118 = vmatmul.mubr.f32.gmra.mrb[0].mxu0 %v1938
      %v2119 = vpop.f32.mrb[0].mxu0
      %v2120 = vadd.f32 %v2016, %v2119
      %v2121 = vpop.f32.mrb[0].mxu0
      %2122 = vmatprep.mubr.f32.mxu0 0.0
      %2123 = vmatmul.mubr.f32.gmra.mrb[0].mxu0 %v1939
      %v2124 = vpop.f32.mrb[0].mxu0
      %v2125 = vadd.f32 %v2016, %v2124
      %v2126 = vpop.f32.mrb[0].mxu0
      %2127 = vmatprep.mubr.f32.mxu0 0.0
      %2128 = vmatmul.mubr.f32.gmra.mrb[0].mxu0 %v1940
      %v2129 = vpop.f32.mrb[0].mxu0
      %v2130 = vadd.f32 %v2016, %v2129
      %v2131 = vpop.f32.mrb[0].mxu0
      %2132 = vmatprep.mubr.f32.mxu0 0.0
      %2133 = vmatmul.mubr.f32.gmra.mrb[0].mxu0 %v1941
      %v2134 = vpop.f32.mrb[0].mxu0
      %v2135 = vadd.f32 %v2016, %v2134
      %v2136 = vpop.f32.mrb[0].mxu0
      %2137 = vmatprep.mubr.f32.mxu0 0.0
      %2138 = vmatmul.mubr.f32.gmra.mrb[0].mxu0 %v1942
      %v2139 = vpop.f32.mrb[0].mxu0
      %v2140 = vadd.f32 %v2016, %v2139
      %v2141 = vpop.f32.mrb[0].mxu0
      %2142 = vmatprep.mubr.f32.mxu0 0.0
      %2143 = vmatmul.mubr.f32.gmra.mrb[0].mxu0 %v1943
      %v2144 = vpop.f32.mrb[0].mxu0
      %v2145 = vadd.f32 %v2016, %v2144
      %v2146 = vpop.f32.mrb[0].mxu0
      %2147 = vmatprep.mubr.f32.mxu0 0.0
      %2148 = vmatmul.mubr.f32.gmra.mrb[0].mxu0 %v1944
      %v2149 = vpop.f32.mrb[0].mxu0
      %v2150 = vadd.f32 %v2016, %v2149
      %v2151 = vpop.f32.mrb[0].mxu0
      %2152 = vmatprep.mubr.f32.mxu0 0.0
      %2153 = vmatmul.mubr.f32.gmra.mrb[0].mxu0 %v1945
      %v2154 = vpop.f32.mrb[0].mxu0
      %v2155 = vadd.f32 %v2016, %v2154
      %v2156 = vpop.f32.mrb[0].mxu0
      %2157 = vmatprep.mubr.f32.mxu0 0.0
      %2158 = vmatmul.mubr.f32.gmra.mrb[0].mxu0 %v1946
      %v2159 = vpop.f32.mrb[0].mxu0
      %v2160 = vadd.f32 %v2016, %v2159
      %v2161 = vpop.f32.mrb[0].mxu0
      %2162 = vmatprep.mubr.f32.mxu0 0.0
      %2163 = vmatmul.mubr.f32.gmra.mrb[0].mxu0 %v1947
      %v2164 = vpop.f32.mrb[0].mxu0
      %v2165 = vadd.f32 %v2016, %v2164
      %v2166 = vpop.f32.mrb[0].mxu0
      %2167 = vmatprep.mubr.f32.mxu0 0.0
      %2168 = vmatmul.mubr.f32.gmra.mrb[0].mxu0 %v1948
      %v2169 = vpop.f32.mrb[0].mxu0
      %v2170 = vadd.f32 %v2016, %v2169
      %v2171 = vpop.f32.mrb[0].mxu0
      %2172 = vmatprep.mubr.f32.mxu0 0.0
      %2173 = vmatmul.mubr.f32.gmra.mrb[0].mxu0 %v1949
      %v2174 = vpop.f32.mrb[0].mxu0
      %v2175 = vadd.f32 %v2016, %v2174
      %v2176 = vpop.f32.mrb[0].mxu0
      %2177 = vmatprep.mubr.f32.mxu0 0.0
      %2178 = vmatmul.mubr.f32.gmra.mrb[0].mxu0 %v1950
      %v2179 = vpop.f32.mrb[0].mxu0
      %v2180 = vadd.f32 %v2016, %v2179
      %v2181 = vpop.f32.mrb[0].mxu0
      %2182 = vmatprep.mubr.f32.mxu0 0.0
      %2183 = vmatmul.mubr.f32.gmra.mrb[0].mxu0 %v1951
      %v2184 = vpop.f32.mrb[0].mxu0
      %v2185 = vadd.f32 %v2016, %v2184
      %v2186 = vpop.f32.mrb[0].mxu0
      %2187 = vmatprep.mubr.f32.mxu0 0.0
      %2188 = vmatmul.mubr.f32.gmra.mrb[0].mxu0 %v1952
      %v2189 = vpop.f32.mrb[0].mxu0
      %v2190 = vadd.f32 %v2016, %v2189
      %v2191 = vpop.f32.mrb[0].mxu0
      %2192 = vmatprep.mubr.f32.mxu0 0.0
      %2193 = vmatmul.mubr.f32.gmra.mrb[0].mxu0 %v1953
      %v2194 = vpop.f32.mrb[0].mxu0
      %v2195 = vadd.f32 %v2016, %v2194
      %v2196 = vpop.f32.mrb[0].mxu0
      %2197 = vmatprep.mubr.f32.mxu0 0.0
      %2198 = vmatmul.mubr.f32.gmra.mrb[0].mxu0 %v1954
      %v2199 = vpop.f32.mrb[0].mxu0
      %v2200 = vadd.f32 %v2016, %v2199
      %v2201 = vpop.f32.mrb[0].mxu0
      %2202 = vmatprep.mubr.f32.mxu0 0.0
      %2203 = vmatmul.mubr.f32.gmra.mrb[0].mxu0 %v1955
      %v2204 = vpop.f32.mrb[0].mxu0
      %v2205 = vadd.f32 %v2016, %v2204
      %v2206 = vpop.f32.mrb[0].mxu0
      %2207 = vmatprep.mubr.f32.mxu0 0.0
      %2208 = vmatmul.mubr.f32.gmra.mrb[0].mxu0 %v1956
      %v2209 = vpop.f32.mrb[0].mxu0
      %v2210 = vadd.f32 %v2016, %v2209
      %v2211 = vpop.f32.mrb[0].mxu0
      %2212 = vmatprep.mubr.f32.mxu0 0.0
      %2213 = vmatmul.mubr.f32.gmra.mrb[0].mxu0 %v1957
      %v2214 = vpop.f32.mrb[0].mxu0
      %v2215 = vadd.f32 %v2016, %v2214
      %v2216 = vpop.f32.mrb[0].mxu0
      %2217 = vmatprep.mubr.f32.mxu0 0.0
      %2218 = vmatmul.mubr.f32.gmra.mrb[0].mxu0 %v1958
      %v2219 = vpop.f32.mrb[0].mxu0
      %v2220 = vadd.f32 %v2016, %v2219
      %v2221 = vpop.f32.mrb[0].mxu0
      %2222 = vmatprep.mubr.f32.mxu0 0.0
      %2223 = vmatmul.mubr.f32.gmra.mrb[0].mxu0 %v1959
      %v2224 = vpop.f32.mrb[0].mxu0
      %v2225 = vadd.f32 %v2016, %v2224
      %v2226 = vpop.f32.mrb[0].mxu0
      %2227 = vmatprep.mubr.f32.mxu0 0.0
      %2228 = vmatmul.mubr.f32.gmra.mrb[0].mxu0 %v1960
      %v2229 = vpop.f32.mrb[0].mxu0
      %v2230 = vadd.f32 %v2016, %v2229
      %v2231 = vpop.f32.mrb[0].mxu0
      %2232 = vmatprep.mubr.f32.mxu0 0.0
      %2233 = vmatmul.mubr.f32.gmra.mrb[0].mxu0 %v1961
      %v2234 = vpop.f32.mrb[0].mxu0
      %v2235 = vadd.f32 %v2016, %v2234
      %v2236 = vpop.f32.mrb[0].mxu0
      %2237 = vmatprep.mubr.f32.mxu0 0.0
      %2238 = vmatmul.mubr.f32.gmra.mrb[0].mxu0 %v1962
      %v2239 = vpop.f32.mrb[0].mxu0
      %v2240 = vadd.f32 %v2016, %v2239
      %v2241 = vpop.f32.mrb[0].mxu0
      %2242 = vmatprep.mubr.f32.mxu0 0.0
      %2243 = vmatmul.mubr.f32.gmra.mrb[0].mxu0 %v1963
      %v2244 = vpop.f32.mrb[0].mxu0
      %v2245 = vadd.f32 %v2016, %v2244
      %v2246 = vpop.f32.mrb[0].mxu0
      %2247 = vmatprep.mubr.f32.mxu0 0.0
      %2248 = vmatmul.mubr.f32.gmra.mrb[0].mxu0 %v1964
      %v2249 = vpop.f32.mrb[0].mxu0
      %v2250 = vadd.f32 %v2016, %v2249
      %v2251 = vpop.f32.mrb[0].mxu0
      %2252 = vmatprep.mubr.f32.mxu0 0.0
      %2253 = vmatmul.mubr.f32.gmra.mrb[0].mxu0 %v1965
      %v2254 = vpop.f32.mrb[0].mxu0
      %v2255 = vadd.f32 %v2016, %v2254
      %v2256 = vpop.f32.mrb[0].mxu0
      %2257 = vmatprep.mubr.f32.mxu0 0.0
      %2258 = vmatmul.mubr.f32.gmra.mrb[0].mxu0 %v1966
      %v2259 = vpop.f32.mrb[0].mxu0
      %v2260 = vadd.f32 %v2016, %v2259
      %v2261 = vpop.f32.mrb[0].mxu0
      %2262 = vmatprep.mubr.f32.mxu0 0.0
      %2263 = vmatmul.mubr.f32.gmra.mrb[0].mxu0 %v1967
      %v2264 = vpop.f32.mrb[0].mxu0
      %v2265 = vadd.f32 %v2016, %v2264
      %v2266 = vpop.f32.mrb[0].mxu0
      %2267 = vmatprep.mubr.f32.mxu0 0.0
      %2268 = vmatmul.mubr.f32.gmra.mrb[0].mxu0 %v1968
      %v2269 = vpop.f32.mrb[0].mxu0
      %v2270 = vadd.f32 %v2016, %v2269
      %v2271 = vpop.f32.mrb[0].mxu0
      %2272 = vmatprep.mubr.f32.mxu0 0.0
      %2273 = vmatmul.mubr.f32.gmra.mrb[0].mxu0 %v1969
      %v2274 = vpop.f32.mrb[0].mxu0
      %v2275 = vadd.f32 %v2016, %v2274
      %v2276 = vpop.f32.mrb[0].mxu0
      %2277 = vmatprep.mubr.f32.mxu0 0.0
      %2278 = vmatmul.mubr.f32.gmra.mrb[0].mxu0 %v1970
      %v2279 = vpop.f32.mrb[0].mxu0
      %v2280 = vadd.f32 %v2016, %v2279
      %v2281 = vpop.f32.mrb[0].mxu0
      %2282 = vmatprep.mubr.f32.mxu0 0.0
      %2283 = vmatmul.mubr.f32.gmra.mrb[0].mxu0 %v1971
      %v2284 = vpop.f32.mrb[0].mxu0
      %v2285 = vadd.f32 %v2016, %v2284
      %v2286 = vpop.f32.mrb[0].mxu0
      %2287 = vmatprep.mubr.f32.mxu0 0.0
      %2288 = vmatmul.mubr.f32.gmra.mrb[0].mxu0 %v1972
      %v2289 = vpop.f32.mrb[0].mxu0
      %v2290 = vadd.f32 %v2016, %v2289
      %v2291 = vpop.f32.mrb[0].mxu0
      %2292 = vmatprep.mubr.f32.mxu0 0.0
      %2293 = vmatmul.mubr.f32.gmra.mrb[0].mxu0 %v1973
      %v2294 = vpop.f32.mrb[0].mxu0
      %v2295 = vadd.f32 %v2016, %v2294
      %v2296 = vpop.f32.mrb[0].mxu0
      %2297 = vmatprep.mubr.f32.mxu0 0.0
      %2298 = vmatmul.mubr.f32.gmra.mrb[0].mxu0 %v1974
      %v2299 = vpop.f32.mrb[0].mxu0
      %v2300 = vadd.f32 %v2016, %v2299
      %v2301 = vpop.f32.mrb[0].mxu0
      %2302 = vmatprep.mubr.f32.mxu0 0.0
      %2303 = vmatmul.mubr.f32.gmra.mrb[0].mxu0 %v1975
      %v2304 = vpop.f32.mrb[0].mxu0
      %v2305 = vadd.f32 %v2016, %v2304
      %v2306 = vpop.f32.mrb[0].mxu0
      %2307 = vmatprep.mubr.f32.mxu0 0.0
      %2308 = vmatmul.mubr.f32.gmra.mrb[0].mxu0 %v1976
      %v2309 = vpop.f32.mrb[0].mxu0
      %v2310 = vadd.f32 %v2016, %v2309
      %v2311 = vpop.f32.mrb[0].mxu0
      %2312 = vmatprep.mubr.f32.mxu0 0.0
      %2313 = vmatmul.mubr.f32.gmra.mrb[0].mxu0 %v1977
      %v2314 = vpop.f32.mrb[0].mxu0
      %v2315 = vadd.f32 %v2016, %v2314
      %v2316 = vpop.f32.mrb[0].mxu0
      %2317 = vmatprep.mubr.f32.mxu0 0.0
      %2318 = vmatmul.mubr.f32.gmra.mrb[0].mxu0 %v1978
      %v2319 = vpop.f32.mrb[0].mxu0
      %v2320 = vadd.f32 %v2016, %v2319
      %v2321 = vpop.f32.mrb[0].mxu0
      %2322 = vmatprep.mubr.f32.mxu0 0.0
      %2323 = vmatmul.mubr.f32.gmra.mrb[0].mxu0 %v1979
      %v2324 = vpop.f32.mrb[0].mxu0
      %v2325 = vadd.f32 %v2016, %v2324
      %v2326 = vpop.f32.mrb[0].mxu0
      %2327 = vmatprep.mubr.f32.mxu0 0.0
      %2328 = vmatmul.mubr.f32.gmra.mrb[0].mxu0 %v1980
      %v2329 = vpop.f32.mrb[0].mxu0
      %v2330 = vadd.f32 %v2016, %v2329
      %v2331 = vpop.f32.mrb[0].mxu0
      %2332 = vmatprep.mubr.f32.mxu0 0.0
      %2333 = vmatmul.mubr.f32.gmra.mrb[0].mxu0 %v1981
      %v2334 = vpop.f32.mrb[0].mxu0
      %v2335 = vadd.f32 %v2016, %v2334
      %v2336 = vpop.f32.mrb[0].mxu0
      %2337 = vmatprep.mubr.f32.mxu0 0.0
      %2338 = vmatmul.mubr.f32.gmra.mrb[0].mxu0 %v1982
      %v2339 = vpop.f32.mrb[0].mxu0
      %v2340 = vadd.f32 %v2016, %v2339
      %v2341 = vpop.f32.mrb[0].mxu0
      %2342 = vmatprep.mubr.f32.mxu0 0.0
      %2343 = vmatmul.mubr.f32.gmra.mrb[0].mxu0 %v1983
      %v2344 = vpop.f32.mrb[0].mxu0
      %v2345 = vadd.f32 %v2016, %v2344
      %v2346 = vpop.f32.mrb[0].mxu0
      %2347 = vmatprep.mubr.f32.mxu0 0.0
      %2348 = vmatmul.mubr.f32.gmra.mrb[0].mxu0 %v1984
      %v2349 = vpop.f32.mrb[0].mxu0
      %v2350 = vadd.f32 %v2016, %v2349
      %v2351 = vpop.f32.mrb[0].mxu0
      %2352 = vmatprep.mubr.f32.mxu0 0.0
      %2353 = vmatmul.mubr.f32.gmra.mrb[0].mxu0 %v1985
      %v2354 = vpop.f32.mrb[0].mxu0
      %v2355 = vadd.f32 %v2016, %v2354
      %v2356 = vpop.f32.mrb[0].mxu0
      %2357 = vmatprep.mubr.f32.mxu0 0.0
      %2358 = vmatmul.mubr.f32.gmra.mrb[0].mxu0 %v1986
      %v2359 = vpop.f32.mrb[0].mxu0
      %v2360 = vadd.f32 %v2016, %v2359
      %v2361 = vpop.f32.mrb[0].mxu0
      %2362 = vmatprep.mubr.f32.mxu0 0.0
      %2363 = vmatmul.mubr.f32.gmra.mrb[0].mxu0 %v1987
      %v2364 = vpop.f32.mrb[0].mxu0
      %v2365 = vadd.f32 %v2016, %v2364
      %v2366 = vpop.f32.mrb[0].mxu0
      %2367 = vmatprep.mubr.f32.mxu0 0.0
      %2368 = vmatmul.mubr.f32.gmra.mrb[0].mxu0 %v1988
      %v2369 = vpop.f32.mrb[0].mxu0
      %v2370 = vadd.f32 %v2016, %v2369
      %v2371 = vpop.f32.mrb[0].mxu0
      %2372 = vmatprep.mubr.f32.mxu0 0.0
      %2373 = vmatmul.mubr.f32.gmra.mrb[0].mxu0 %v1989
      %v2374 = vpop.f32.mrb[0].mxu0
      %v2375 = vadd.f32 %v2016, %v2374
      %v2376 = vpop.f32.mrb[0].mxu0
      %2377 = vmatprep.mubr.f32.mxu0 0.0
      %2378 = vmatmul.mubr.f32.gmra.mrb[0].mxu0 %v1990
      %v2379 = vpop.f32.mrb[0].mxu0
      %v2380 = vadd.f32 %v2016, %v2379
      %v2381 = vpop.f32.mrb[0].mxu0
      %2382 = vmatprep.mubr.f32.mxu0 0.0
      %2383 = vmatmul.mubr.f32.gmra.mrb[0].mxu0 %v1991
      %v2384 = vpop.f32.mrb[0].mxu0
      %v2385 = vadd.f32 %v2016, %v2384
      %v2386 = vpop.f32.mrb[0].mxu0
      %2387 = vmatprep.mubr.f32.mxu0 0.0
      %2388 = vmatmul.mubr.f32.gmra.mrb[0].mxu0 %v1992
      %v2389 = vpop.f32.mrb[0].mxu0
      %v2390 = vadd.f32 %v2016, %v2389
      %v2391 = vpop.f32.mrb[0].mxu0
      %2392 = vmatprep.mubr.f32.mxu0 0.0
      %2393 = vmatmul.mubr.f32.gmra.mrb[0].mxu0 %v1993
      %v2394 = vpop.f32.mrb[0].mxu0
      %v2395 = vadd.f32 %v2016, %v2394
      %v2396 = vpop.f32.mrb[0].mxu0
      %2397 = vmatprep.mubr.f32.mxu0 0.0
      %2398 = vmatmul.mubr.f32.gmra.mrb[0].mxu0 %v1994
      %v2399 = vpop.f32.mrb[0].mxu0
      %v2400 = vadd.f32 %v2016, %v2399
      %v2401 = vpop.f32.mrb[0].mxu0
      %2402 = vdwg.mxu0
      %2403 = vst.msk [vmem:[%s334] sm:$0xff] %vm409, %v2085
      %2404 = vst.msk [vmem:[%s334 + $0x8] sm:$0xff] %vm409, %v2090
      %2405 = vst.msk [vmem:[%s334 + $0x10] sm:$0xff] %vm409, %v2095
      %2406 = vst.msk [vmem:[%s334 + $0x18] sm:$0xff] %vm409, %v2100
      %2407 = vst.msk [vmem:[%s334 + $0x20] sm:$0xff] %vm409, %v2105
      %2408 = vst.msk [vmem:[%s334 + $0x28] sm:$0xff] %vm409, %v2110
      %2409 = vst.msk [vmem:[%s334 + $0x30] sm:$0xff] %vm409, %v2115
      %2410 = vst.msk [vmem:[%s334 + $0x38] sm:$0xff] %vm409, %v2120
      %2411 = vst.msk [vmem:[%s334 + $0x40] sm:$0xff] %vm409, %v2125
      %2412 = vst.msk [vmem:[%s334 + $0x48] sm:$0xff] %vm409, %v2130
      %2413 = vst.msk [vmem:[%s334 + $0x50] sm:$0xff] %vm409, %v2135
      %2414 = vst.msk [vmem:[%s334 + $0x58] sm:$0xff] %vm409, %v2140
      %2415 = vst.msk [vmem:[%s334 + $0x60] sm:$0xff] %vm409, %v2145
      %2416 = vst.msk [vmem:[%s334 + $0x68] sm:$0xff] %vm409, %v2150
      %2417 = vst.msk [vmem:[%s334 + $0x70] sm:$0xff] %vm409, %v2155
      %2418 = vst.msk [vmem:[%s334 + $0x78] sm:$0xff] %vm409, %v2160
      %2419 = vst.msk [vmem:[%s334 + $0x80] sm:$0xff] %vm409, %v2165
      %2420 = vst.msk [vmem:[%s334 + $0x88] sm:$0xff] %vm409, %v2170
      %2421 = vst.msk [vmem:[%s334 + $0x90] sm:$0xff] %vm409, %v2175
      %2422 = vst.msk [vmem:[%s334 + $0x98] sm:$0xff] %vm409, %v2180
      %2423 = vst.msk [vmem:[%s334 + $0xa0] sm:$0xff] %vm409, %v2185
      %2424 = vst.msk [vmem:[%s334 + $0xa8] sm:$0xff] %vm409, %v2190
      %2425 = vst.msk [vmem:[%s334 + $0xb0] sm:$0xff] %vm409, %v2195
      %2426 = vst.msk [vmem:[%s334 + $0xb8] sm:$0xff] %vm409, %v2200
      %2427 = vst.msk [vmem:[%s334 + $0xc0] sm:$0xff] %vm409, %v2205
      %2428 = vst.msk [vmem:[%s334 + $0xc8] sm:$0xff] %vm409, %v2210
      %2429 = vst.msk [vmem:[%s334 + $0xd0] sm:$0xff] %vm409, %v2215
      %2430 = vst.msk [vmem:[%s334 + $0xd8] sm:$0xff] %vm409, %v2220
      %2431 = vst.msk [vmem:[%s334 + $0xe0] sm:$0xff] %vm409, %v2225
      %2432 = vst.msk [vmem:[%s334 + $0xe8] sm:$0xff] %vm409, %v2230
      %2433 = vst.msk [vmem:[%s334 + $0xf0] sm:$0xff] %vm409, %v2235
      %2434 = vst.msk [vmem:[%s334 + $0xf8] sm:$0xff] %vm409, %v2240
      %2435 = vst.msk [vmem:[%s334 + $0x100] sm:$0xff] %vm409, %v2245
      %2436 = vst.msk [vmem:[%s334 + $0x108] sm:$0xff] %vm409, %v2250
      %2437 = vst.msk [vmem:[%s334 + $0x110] sm:$0xff] %vm409, %v2255
      %2438 = vst.msk [vmem:[%s334 + $0x118] sm:$0xff] %vm409, %v2260
      %2439 = vst.msk [vmem:[%s334 + $0x120] sm:$0xff] %vm409, %v2265
      %2440 = vst.msk [vmem:[%s334 + $0x128] sm:$0xff] %vm409, %v2270
      %2441 = vst.msk [vmem:[%s334 + $0x130] sm:$0xff] %vm409, %v2275
      %2442 = vst.msk [vmem:[%s334 + $0x138] sm:$0xff] %vm409, %v2280
      %2443 = vst.msk [vmem:[%s334 + $0x140] sm:$0xff] %vm409, %v2285
      %2444 = vst.msk [vmem:[%s334 + $0x148] sm:$0xff] %vm409, %v2290
      %2445 = vst.msk [vmem:[%s334 + $0x150] sm:$0xff] %vm409, %v2295
      %2446 = vst.msk [vmem:[%s334 + $0x158] sm:$0xff] %vm409, %v2300
      %2447 = vst.msk [vmem:[%s334 + $0x160] sm:$0xff] %vm409, %v2305
      %2448 = vst.msk [vmem:[%s334 + $0x168] sm:$0xff] %vm409, %v2310
      %2449 = vst.msk [vmem:[%s334 + $0x170] sm:$0xff] %vm409, %v2315
      %2450 = vst.msk [vmem:[%s334 + $0x178] sm:$0xff] %vm409, %v2320
      %2451 = vst.msk [vmem:[%s334 + $0x180] sm:$0xff] %vm409, %v2325
      %2452 = vst.msk [vmem:[%s334 + $0x188] sm:$0xff] %vm409, %v2330
      %2453 = vst.msk [vmem:[%s334 + $0x190] sm:$0xff] %vm409, %v2335
      %2454 = vst.msk [vmem:[%s334 + $0x198] sm:$0xff] %vm409, %v2340
      %2455 = vst.msk [vmem:[%s334 + $0x1a0] sm:$0xff] %vm409, %v2345
      %2456 = vst.msk [vmem:[%s334 + $0x1a8] sm:$0xff] %vm409, %v2350
      %2457 = vst.msk [vmem:[%s334 + $0x1b0] sm:$0xff] %vm409, %v2355
      %2458 = vst.msk [vmem:[%s334 + $0x1b8] sm:$0xff] %vm409, %v2360
      %2459 = vst.msk [vmem:[%s334 + $0x1c0] sm:$0xff] %vm409, %v2365
      %2460 = vst.msk [vmem:[%s334 + $0x1c8] sm:$0xff] %vm409, %v2370
      %2461 = vst.msk [vmem:[%s334 + $0x1d0] sm:$0xff] %vm409, %v2375
      %2462 = vst.msk [vmem:[%s334 + $0x1d8] sm:$0xff] %vm409, %v2380
      %2463 = vst.msk [vmem:[%s334 + $0x1e0] sm:$0xff] %vm409, %v2385
      %2464 = vst.msk [vmem:[%s334 + $0x1e8] sm:$0xff] %vm409, %v2390
      %2465 = vst.msk [vmem:[%s334 + $0x1f0] sm:$0xff] %vm409, %v2395
      %2466 = vst.msk [vmem:[%s334 + $0x1f8] sm:$0xff] %vm409, %v2400
      %s2467 = smul.u32 64, %s20
      %p2468 = scmp.lt.s32.totalorder %s2467, 127
      %s2469 = scalar_select %p2468, %s2467, 127
      %s2470 = smul.addr %s2469, 8
      %s2471 = scalar_lea.vmem %s9, %s2470
      // Predicated region
      $region57: #{tpu_custom_call.1} parent=55 // pred_check
        %p2472 = pneg %p232
      $region58: #{tpu_custom_call.1} parent=55 // pred_check_branch
        %2474 = sbr.rel (%p2472) target = $region60
      $region59: #{tpu_custom_call.1} parent=55 // pred_region
        %s2475 = smul.u32 64, %s20
      $region60: #{tpu_custom_call.1} parent=55 // pred_fallthru
        _
    $region56: #{tpu_custom_call.1} parent=5 // pred_fallthru
      _
    %p2476 = scmp.le.s32.totalorder 2, %s15
    // Predicated region
    $region61: #{tpu_custom_call.1} parent=5 // pred_check
      %p2477 = pneg %p2476
    $region62: #{tpu_custom_call.1} parent=5 // pred_check_branch
      %2479 = sbr.rel (%p2477) target = $region64
    $region63: #{tpu_custom_call.1} parent=5 // pred_region
      %s2480 = ssub.s32 %s15, 2
      // Predicated region
      $region65: #{tpu_custom_call.1} parent=63 // pred_check
        %p2481 = pneg %p238
      $region66: #{tpu_custom_call.1} parent=63 // pred_check_branch
        %2483 = sbr.rel (%p2481) target = $region68
      $region67: #{tpu_custom_call.1} parent=63 // pred_region
        %s2484 = smul.u32 64, %s21
        %p2485 = scmp.lt.s32.totalorder %s2484, 127
        %s2486 = scalar_select %p2485, %s2484, 127
        %s2487 = smul.addr %s2486, 8
        %s2488 = scalar_lea.vmem %s9, %s2487
      $region68: #{tpu_custom_call.1} parent=63 // pred_fallthru
        _
    $region64: #{tpu_custom_call.1} parent=5 // pred_fallthru
      _
  $region6: #{tpu_custom_call.1} parent=0 // loop_footer
    %s19 = sadd.s32 1, %s15
  $region7: #{tpu_custom_call.1} parent=0 // loop_footer_branch
    %14 = sbr.rel target = $region3
  $region8: #{tpu_custom_call.1} parent=0 // loop_exit
    _

</llo_original>
